<compile_context>
chip_gen: v6e
topology: v6e:2x2x1
jax: 0.10.0
libtpu: 0.0.40
codegen_flags: <defaults>
</compile_context>

<pallas_src>
import math
from functools import partial

import jax
import jax.numpy as jnp
from jax.experimental import pallas as pl
from jax.experimental.pallas import tpu as pltpu

EPS = 1e-5
SQRT_HALF = math.sqrt(0.5)
MXU_DTYPE = jnp.bfloat16        # bf16 operands, f32 accumulation (all TPU gens)
MAX_TILE_M = 512                # fc1/fc2 rows per grid step (mem-bound amortization)
_TARGET_CONV_ROWS = 256         # rows per conv grid step (MXU M occupancy)


def _default_vmem_limit():
    # Generation-aware VMEM ceiling: ~3/4 of physical (64 MiB on v7x,
    # 128 MiB on v5e/v6e), capped at 100 MiB.  Conservative fallback: 48 MiB.
    try:
        cap = pltpu.get_tpu_info().vmem_capacity_bytes
        return min(100 * 1024 * 1024, int(cap) * 3 // 4)
    except Exception:
        return 48 * 1024 * 1024


_VMEM_LIMIT = _default_vmem_limit()


def _cparams(n_parallel_axes):
    return pltpu.CompilerParams(
        dimension_semantics=("parallel",) * n_parallel_axes,
        vmem_limit_bytes=_VMEM_LIMIT)


def _round_up(x, m):
    return ((x + m - 1) // m) * m


def _mxu(v):
    return v.astype(MXU_DTYPE)


def _conv_group(B, T):
    """Sequences per conv grid step so the MXU M-dim sees >= ~256 rows."""
    if T % 8 != 0:
        return B                     # block must span the full (B*T) axis
    target = min(B, max(1, -(-_TARGET_CONV_ROWS // T)))
    for g in range(target, 0, -1):
        if B % g == 0:
            return g
    return 1


def _ln_f32(x, g, b):
    mean = jnp.mean(x, axis=-1, keepdims=True)
    xc = x - mean
    var = jnp.mean(xc * xc, axis=-1, keepdims=True)
    return xc * jax.lax.rsqrt(var + EPS) * g + b


# ------------------- fused LayerNorm(embed) + fc1 (M-tiled) ------------------
def _embed_ln_fc1_kernel(x_ref, g_ref, b_ref, w_ref, wb_ref, emb_ref, y_ref):
    x = x_ref[...].astype(jnp.float32)                     # (tm, E)
    ln = _ln_f32(x, g_ref[...], b_ref[...])
    emb_ref[...] = ln.astype(emb_ref.dtype)                # input_embedding
    y = jnp.dot(_mxu(ln), w_ref[...],
                preferred_element_type=jnp.float32) + wb_ref[...]
    y_ref[...] = y.astype(y_ref.dtype)


def embed_ln_fc1(x2d, g, b, w, wb):
    M, E = x2d.shape
    C = w.shape[1]
    tm = min(MAX_TILE_M, _round_up(M, 8))
    return pl.pallas_call(
        _embed_ln_fc1_kernel,
        out_shape=(jax.ShapeDtypeStruct((M, E), x2d.dtype),
                   jax.ShapeDtypeStruct((M, C), x2d.dtype)),
        grid=(pl.cdiv(M, tm),),
        in_specs=[pl.BlockSpec((tm, E), lambda i: (i, 0)),
                  pl.BlockSpec((1, E), lambda i: (0, 0)),
                  pl.BlockSpec((1, E), lambda i: (0, 0)),
                  pl.BlockSpec((E, C), lambda i: (0, 0)),   # resident weight
                  pl.BlockSpec((1, C), lambda i: (0, 0))],
        out_specs=(pl.BlockSpec((tm, E), lambda i: (i, 0)),
                   pl.BlockSpec((tm, C), lambda i: (i, 0))),
        compiler_params=_cparams(1),
    )(x2d, g.reshape(1, E), b.reshape(1, E), _mxu(w), wb.reshape(1, C))


# --------------- masked conv + GLU via roll-taps, K accumulated matmuls ------
def _conv_glu(xm, w_ref, b_ref, *, K, pad_l, seq_len):
    """xm: (Mb, Cin) masked rows (Mb = G*seq_len).  w_ref: (K, Cin, 2*Cout)."""
    Mb, _ = xm.shape
    C2 = b_ref.shape[-1]
    t_idx = jax.lax.broadcasted_iota(jnp.int32, xm.shape, 0) % seq_len
    acc = None
    for k in range(K):
        s = k - pad_l                                      # time offset of tap k
        if s == 0:
            tap = xm
        else:
            shifted = pltpu.roll(xm, shift=(-s) % Mb, axis=0)  # shifted[i]=xm[(i+s)%Mb]
            valid = (t_idx + s >= 0) & (t_idx + s < seq_len)   # stay inside sequence
            tap = jnp.where(valid, shifted, 0.0)
        part = jnp.dot(_mxu(tap), w_ref[k], preferred_element_type=jnp.float32)
        acc = part if acc is None else acc + part
    acc = acc + b_ref[...]
    Cout = C2 // 2
    return acc[:, :Cout] * jax.nn.sigmoid(acc[:, Cout:])   # GLU


# -------------- per-layer conv kernels (flattened (G*T, C) blocks) -----------
def _conv_res_kernel(x_ref, keep_ref, res_ref, w_ref, b_ref, g_ref, bb_ref,
                     o_ref, *, K, pad_l, seq_len):
    xm = x_ref[...].astype(jnp.float32) * keep_ref[...]    # masked_fill(pad, 0)
    conv = _conv_glu(xm, w_ref, b_ref, K=K, pad_l=pad_l, seq_len=seq_len)
    h = (conv + res_ref[...].astype(jnp.float32)) * SQRT_HALF
    o_ref[...] = _ln_f32(h, g_ref[...], bb_ref[...]).astype(o_ref.dtype)


def _conv_nores_kernel(x_ref, keep_ref, w_ref, b_ref, g_ref, bb_ref,
                       o_ref, *, K, pad_l, seq_len):
    xm = x_ref[...].astype(jnp.float32) * keep_ref[...]
    conv = _conv_glu(xm, w_ref, b_ref, K=K, pad_l=pad_l, seq_len=seq_len)
    o_ref[...] = _ln_f32(conv, g_ref[...], bb_ref[...]).astype(o_ref.dtype)


def conv_layer(x, keep, residual, lw, *, K, pad_l, seq_len):
    """x: (M=B*T, Cin) flat activations, keep: (M, 1)."""
    M, Cin = x.shape
    B = M // seq_len
    C2 = lw["conv_b"].shape[0]
    Cout = C2 // 2
    G = _conv_group(B, seq_len)
    Mb = G * seq_len
    w3d = _mxu(lw["conv_w"])                               # (K, Cin, 2*Cout) bf16
    conv_b = lw["conv_b"].reshape(1, C2)
    norm_g = lw["norm_g"].reshape(1, Cout)
    norm_b = lw["norm_b"].reshape(1, Cout)

    x_spec = pl.BlockSpec((Mb, Cin), lambda i: (i, 0))
    keep_spec = pl.BlockSpec((Mb, 1), lambda i: (i, 0))
    w_spec = pl.BlockSpec((K, Cin, C2), lambda i: (0, 0, 0))   # resident weight
    vec_specs = [pl.BlockSpec((1, C2), lambda i: (0, 0)),
                 pl.BlockSpec((1, Cout), lambda i: (0, 0)),
                 pl.BlockSpec((1, Cout), lambda i: (0, 0))]
    out_spec = pl.BlockSpec((Mb, Cout), lambda i: (i, 0))

    if residual is not None:
        kern = partial(_conv_res_kernel, K=K, pad_l=pad_l, seq_len=seq_len)
        in_specs = ([x_spec, keep_spec,
                     pl.BlockSpec((Mb, Cout), lambda i: (i, 0)), w_spec]
                    + vec_specs)
        args = (x, keep, residual, w3d, conv_b, norm_g, norm_b)
    else:
        # no DMA'd zeros stream for layers without residual
        kern = partial(_conv_nores_kernel, K=K, pad_l=pad_l, seq_len=seq_len)
        in_specs = [x_spec, keep_spec, w_spec] + vec_specs
        args = (x, keep, w3d, conv_b, norm_g, norm_b)

    return pl.pallas_call(
        kern,
        out_shape=jax.ShapeDtypeStruct((M, Cout), x.dtype),
        grid=(M // Mb,),
        in_specs=in_specs,
        out_specs=out_spec,
        compiler_params=_cparams(1),
    )(*args)


# -------- last layer: masked conv + GLU + attention + cat/GLU + res + LN -----
def _attn_body(x_ref, keep_ref, bias_ref, w_ref, b_ref, wq_ref, bq_ref,
               wo_ref, bo_ref, *, K, pad_l):
    T = x_ref.shape[1]
    xm = x_ref[0].astype(jnp.float32) * keep_ref[0]        # (T, Cin) masked target
    conv = _conv_glu(xm, w_ref, b_ref, K=K, pad_l=pad_l, seq_len=T)
    # AttentionLayer: q = (in_proj(conv) + target_embedding) * sqrt(0.5)
    q = (jnp.dot(_mxu(conv), wq_ref[...], preferred_element_type=jnp.float32)
         + bq_ref[...] + xm) * SQRT_HALF
    # scores[t, s] = <q[t], conv[s]>, additive -inf at padded keys
    scores = jax.lax.dot_general(_mxu(q), _mxu(conv), (((1,), (1,)), ((), ())),
                                 preferred_element_type=jnp.float32)
    scores = scores + bias_ref[0]
    # NOTE: fully-padded sequences produce NaN rows here, same as torch softmax
    # over an all -inf row.
    scores = scores - jnp.max(scores, axis=-1, keepdims=True)
    p = jnp.exp(scores)
    p = p * pl.reciprocal(jnp.sum(p, axis=-1, keepdims=True), approx=True)
    ctx = jnp.dot(_mxu(p), _mxu(conv), preferred_element_type=jnp.float32)
    ctx = ctx * (T * math.sqrt(1.0 / T))                   # spec: s = size(1) = T
    attn = (jnp.dot(_mxu(ctx), wo_ref[...], preferred_element_type=jnp.float32)
            + bo_ref[...] + conv) * SQRT_HALF
    # GLU(cat([conv, attn], dim=-1)) == conv * sigmoid(attn)
    return conv * jax.nn.sigmoid(attn)


def _conv_attn_res_kernel(x_ref, keep_ref, bias_ref, res_ref, w_ref, b_ref,
                          wq_ref, bq_ref, wo_ref, bo_ref, g_ref, bb_ref, o_ref,
                          *, K, pad_l):
    h = _attn_body(x_ref, keep_ref, bias_ref, w_ref, b_ref, wq_ref, bq_ref,
                   wo_ref, bo_ref, K=K, pad_l=pad_l)
    h = (h + res_ref[0].astype(jnp.float32)) * SQRT_HALF
    o_ref[0] = _ln_f32(h, g_ref[...], bb_ref[...]).astype(o_ref.dtype)


def _conv_attn_nores_kernel(x_ref, keep_ref, bias_ref, w_ref, b_ref,
                            wq_ref, bq_ref, wo_ref, bo_ref, g_ref, bb_ref,
                            o_ref, *, K, pad_l):
    h = _attn_body(x_ref, keep_ref, bias_ref, w_ref, b_ref, wq_ref, bq_ref,
                   wo_ref, bo_ref, K=K, pad_l=pad_l)
    o_ref[0] = _ln_f32(h, g_ref[...], bb_ref[...]).astype(o_ref.dtype)


def conv_attn_layer(x, keep, mask_bias, residual, lw, *, K, pad_l):
    """x: (B, T, Cin), keep: (B, T, 1), mask_bias: (B, 1, T)."""
    B, T, Cin = x.shape
    C2 = lw["conv_b"].shape[0]
    Cout = C2 // 2
    assert Cin == Cout, "attention layer requires equal in/out channels"
    w3d = _mxu(lw["conv_w"])
    conv_b = lw["conv_b"].reshape(1, C2)
    norm_g = lw["norm_g"].reshape(1, Cout)
    norm_b = lw["norm_b"].reshape(1, Cout)
    wq, wo = _mxu(lw["attn_wq"]), _mxu(lw["attn_wo"])
    bq, bo = lw["attn_bq"].reshape(1, Cout), lw["attn_bo"].reshape(1, Cout)

    base_specs = [pl.BlockSpec((1, T, Cin), lambda i: (i, 0, 0)),
                  pl.BlockSpec((1, T, 1), lambda i: (i, 0, 0)),
                  pl.BlockSpec((1, 1, T), lambda i: (i, 0, 0))]
    weight_specs = [pl.BlockSpec((K, Cin, C2), lambda i: (0, 0, 0)),
                    pl.BlockSpec((1, C2), lambda i: (0, 0)),
                    pl.BlockSpec((Cout, Cout), lambda i: (0, 0)),
                    pl.BlockSpec((1, Cout), lambda i: (0, 0)),
                    pl.BlockSpec((Cout, Cout), lambda i: (0, 0)),
                    pl.BlockSpec((1, Cout), lambda i: (0, 0)),
                    pl.BlockSpec((1, Cout), lambda i: (0, 0)),
                    pl.BlockSpec((1, Cout), lambda i: (0, 0))]
    out_spec = pl.BlockSpec((1, T, Cout), lambda i: (i, 0, 0))

    if residual is not None:
        kern = partial(_conv_attn_res_kernel, K=K, pad_l=pad_l)
        in_specs = (base_specs
                    + [pl.BlockSpec((1, T, Cout), lambda i: (i, 0, 0))]
                    + weight_specs)
        args = (x, keep, mask_bias, residual, w3d, conv_b,
                wq, bq, wo, bo, norm_g, norm_b)
    else:
        kern = partial(_conv_attn_nores_kernel, K=K, pad_l=pad_l)
        in_specs = base_specs + weight_specs
        args = (x, keep, mask_bias, w3d, conv_b, wq, bq, wo, bo, norm_g, norm_b)

    return pl.pallas_call(
        kern,
        out_shape=jax.ShapeDtypeStruct((B, T, Cout), x.dtype),
        grid=(B,),
        in_specs=in_specs,
        out_specs=out_spec,
        compiler_params=_cparams(1),
    )(*args)


# ----------------- fused fc2 + pad-mask + residual mix (M-tiled) -------------
def _final_kernel(x_ref, w_ref, b_ref, keep_ref, emb_ref, xo_ref, yo_ref):
    y = jnp.dot(_mxu(x_ref[...]), w_ref[...],
                preferred_element_type=jnp.float32) + b_ref[...]
    y = y * keep_ref[...]                                  # masked_fill(pad, 0)
    xo_ref[...] = y.astype(xo_ref.dtype)
    yo_ref[...] = ((y + emb_ref[...].astype(jnp.float32)) * SQRT_HALF
                   ).astype(yo_ref.dtype)


def final_fc2(x, w, b, keep, input_embedding):
    M, C = x.shape
    E = w.shape[1]
    tm = min(MAX_TILE_M, _round_up(M, 8))
    return pl.pallas_call(
        _final_kernel,
        out_shape=(jax.ShapeDtypeStruct((M, E), x.dtype),
                   jax.ShapeDtypeStruct((M, E), x.dtype)),
        grid=(pl.cdiv(M, tm),),
        in_specs=[pl.BlockSpec((tm, C), lambda i: (i, 0)),
                  pl.BlockSpec((C, E), lambda i: (0, 0)),   # resident weight
                  pl.BlockSpec((1, E), lambda i: (0, 0)),
                  pl.BlockSpec((tm, 1), lambda i: (i, 0)),
                  pl.BlockSpec((tm, E), lambda i: (i, 0))],
        out_specs=(pl.BlockSpec((tm, E), lambda i: (i, 0)),
                   pl.BlockSpec((tm, E), lambda i: (i, 0))),
        compiler_params=_cparams(1),
    )(x, _mxu(w), b.reshape(1, E), keep, input_embedding)


# --------------------------- parameter setup ---------------------------------
def extend_conv_spec(convolutions):
    ext = []
    for spec in convolutions:
        if len(spec) == 3:
            ext.append(spec)
        elif len(spec) == 2:
            ext.append(spec + (1,))
        else:
            raise Exception("invalid conv spec " + str(spec))
    return tuple(ext)


def init_params(key, embed_dim, convolutions, dropout):
    convolutions = extend_conv_spec(convolutions)
    in_channels = convolutions[0][0]
    n_layers = len(convolutions)
    keys = jax.random.split(key, 2 + 3 * n_layers)
    ki = iter(range(len(keys)))

    params = {"embed_norm_g": jnp.ones((embed_dim,), jnp.float32),
              "embed_norm_b": jnp.zeros((embed_dim,), jnp.float32)}
    std = math.sqrt((1.0 - dropout) / embed_dim)
    params["fc1_w"] = std * jax.random.normal(keys[next(ki)],
                                              (embed_dim, in_channels), jnp.float32)
    params["fc1_b"] = jnp.zeros((in_channels,), jnp.float32)

    layers, cfgs = [], []
    for i, (out_channels, kernel_size, residual) in enumerate(convolutions):
        if kernel_size % 2 == 1:
            pad_l = pad_r = kernel_size // 2
        else:
            pad_l = (kernel_size - 1) // 2
            pad_r = kernel_size // 2
        has_attn = (i == n_layers - 1)                     # attention only on last layer
        cfgs.append((kernel_size, pad_l, pad_r, residual, has_attn))

        layer = {}
        std = math.sqrt(4.0 * (1.0 - dropout) / (kernel_size * in_channels))
        layer["conv_w"] = std * jax.random.normal(
            keys[next(ki)], (kernel_size, in_channels, out_channels * 2), jnp.float32)
        layer["conv_b"] = jnp.zeros((out_channels * 2,), jnp.float32)
        layer["norm_g"] = jnp.ones((out_channels,), jnp.float32)
        layer["norm_b"] = jnp.zeros((out_channels,), jnp.float32)
        if has_attn:
            ka, kb = jax.random.split(keys[next(ki)])
            std_in = math.sqrt(1.0 / out_channels)
            layer["attn_wq"] = std_in * jax.random.normal(
                ka, (out_channels, out_channels), jnp.float32)
            layer["attn_bq"] = jnp.zeros((out_channels,), jnp.float32)
            layer["attn_wo"] = std_in * jax.random.normal(
                kb, (out_channels, out_channels), jnp.float32)
            layer["attn_bo"] = jnp.zeros((out_channels,), jnp.float32)
        else:
            next(ki)
        in_channels = out_channels
        layers.append(layer)
    params["layers"] = layers

    std = math.sqrt(1.0 / in_channels)
    params["fc2_w"] = std * jax.random.normal(keys[next(ki)],
                                              (in_channels, embed_dim), jnp.float32)
    params["fc2_b"] = jnp.zeros((embed_dim,), jnp.float32)
    return params, tuple(cfgs)


# ------------------------------ forward --------------------------------------
def make_forward(layer_cfgs):
    """layer_cfgs: static tuple of (K, pad_l, pad_r, residual, has_attn)."""

    @jax.jit
    def forward(params, src_tokens, embed):
        # embed: (B, T, E) = share_embed_model.transformer(src_tokens)[0]
        B, T, E = embed.shape
        M = B * T
        input_embedding, x = embed_ln_fc1(
            embed.reshape(M, E), params["embed_norm_g"], params["embed_norm_b"],
            params["fc1_w"], params["fc1_b"])                       # (M, E), (M, C)

        pad = src_tokens == 0                                            # (B, T)
        keep2d = jnp.where(pad, 0.0, 1.0).astype(x.dtype).reshape(M, 1)
        keep3d = keep2d.reshape(B, T, 1)
        mask_bias = jnp.where(pad, -jnp.inf, 0.0).astype(jnp.float32)[:, None, :]

        residuals = [x]
        for lw, (K, pad_l, _pad_r, res_layer, has_attn) in zip(params["layers"],
                                                               layer_cfgs):
            residual = residuals[-res_layer] if res_layer > 0 else None
            if has_attn:
                Cin = x.shape[-1]
                res3 = (residual.reshape(B, T, -1) if residual is not None
                        else None)
                x3 = conv_attn_layer(x.reshape(B, T, Cin), keep3d, mask_bias,
                                     res3, lw, K=K, pad_l=pad_l)
                x = x3.reshape(M, -1)
            else:
                x = conv_layer(x, keep2d, residual, lw, K=K, pad_l=pad_l,
                               seq_len=T)
            residuals.append(x)

        xo, yo = final_fc2(x, params["fc2_w"], params["fc2_b"],
                           keep2d, input_embedding)
        return {"src_tokens": src_tokens,
                "encoder_out": (xo.reshape(B, T, E), yo.reshape(B, T, E)),
                "encoder_padding_mask": pad}

    return forward


# ------------------------ pure-JAX reference (check) --------------------------
def reference_forward(params, layer_cfgs, src_tokens, embed):
    hp = jax.lax.Precision.HIGHEST

    def ln(v, g, b):
        m = jnp.mean(v, -1, keepdims=True)
        var = jnp.mean((v - m) ** 2, -1, keepdims=True)
        return (v - m) * jax.lax.rsqrt(var + EPS) * g + b

    x = ln(embed, params["embed_norm_g"], params["embed_norm_b"])
    input_embedding = x
    x = jnp.einsum("btc,cd->btd", x, params["fc1_w"], precision=hp) + params["fc1_b"]
    pad = src_tokens == 0
    keep = jnp.where(pad, 0.0, 1.0)[:, :, None]
    T = x.shape[1]
    residuals = [x]
    for lw, (K, pad_l, pad_r, res_layer, has_attn) in zip(params["layers"], layer_cfgs):
        res = residuals[-res_layer] if res_layer > 0 else None
        xm = x * keep
        tgt = xm
        xp = jnp.pad(xm, ((0, 0), (pad_l, pad_r), (0, 0)))
        conv = sum(jnp.einsum("btc,cd->btd", xp[:, k:k + T, :], lw["conv_w"][k],
                              precision=hp) for k in range(K)) + lw["conv_b"]
        Cout = conv.shape[-1] // 2
        h = conv[..., :Cout] * jax.nn.sigmoid(conv[..., Cout:])
        if has_attn:
            q = (jnp.einsum("btc,cd->btd", h, lw["attn_wq"], precision=hp)
                 + lw["attn_bq"] + tgt) * SQRT_HALF
            s = jnp.einsum("btc,bsc->bts", q, h, precision=hp)
            s = jnp.where(pad[:, None, :], -jnp.inf, s)
            p = jax.nn.softmax(s, axis=-1)
            ctx = jnp.einsum("bts,bsc->btc", p, h, precision=hp) * (T * math.sqrt(1.0 / T))
            a_out = (jnp.einsum("btc,cd->btd", ctx, lw["attn_wo"], precision=hp)
                     + lw["attn_bo"] + h) * SQRT_HALF
            h = h * jax.nn.sigmoid(a_out)
        if res is not None:
            h = (h + res) * SQRT_HALF
        x = ln(h, lw["norm_g"], lw["norm_b"])
        residuals.append(x)
    xo = jnp.einsum("btc,cd->btd", x, params["fc2_w"], precision=hp) + params["fc2_b"]
    xo = xo * keep
    yo = (xo + input_embedding) * SQRT_HALF
    return xo, yo


# ------------------------------- main -----------------------------------------
if __name__ == "__main__":
    key = jax.random.PRNGKey(0)
    B, T = 2, 8
    embed_dim = 32
    convolutions = ((16, 3),) * 3
    dropout = 0.1

    k_param, k_tok, k_emb = jax.random.split(key, 3)
    params, layer_cfgs = init_params(k_param, embed_dim, convolutions, dropout)

    src_tokens = jax.random.randint(k_tok, (B, T), 1, 50, dtype=jnp.int32)
    src_tokens = src_tokens.at[1, -3:].set(0)       # padded tail on batch element 1
    # TODO(synk): external GPT-2 transformer output stubbed with random embeddings.
    embed = jax.random.normal(k_emb, (B, T, embed_dim), jnp.float32)

    forward = make_forward(layer_cfgs)
    out = forward(params, src_tokens, embed)
    x_out, y_out = out["encoder_out"]
    jax.block_until_ready(x_out)
    jax.block_until_ready(y_out)

    # correctness vs. pure-JAX f32 reference (bf16 MXU operands + approx
    # softmax reciprocal -> relaxed max tolerance, tight mean tolerance)
    ref_x, ref_y = reference_forward(params, layer_cfgs, src_tokens, embed)
    err_max = max(float(jnp.max(jnp.abs(x_out - ref_x))),
                  float(jnp.max(jnp.abs(y_out - ref_y))))
    err_mean = max(float(jnp.mean(jnp.abs(x_out - ref_x))),
                   float(jnp.mean(jnp.abs(y_out - ref_y))))

    assert x_out.shape == (B, T, embed_dim) and y_out.shape == (B, T, embed_dim)
    assert bool(jnp.all(jnp.isfinite(x_out))) and bool(jnp.all(jnp.isfinite(y_out)))
    # padded positions of x_out must be exactly zero (masked_fill semantics)
    assert bool(jnp.all(x_out[1, -3:, :] == 0.0))
    assert err_max < 8e-2 and err_mean < 2e-2, \
        f"mismatch vs pure-JAX reference: max={err_max} mean={err_mean}"
    print("KERNEL_OK")
</pallas_src>

<mosaic_0001>
module attributes {stable_mosaic.version = 11 : i64} {
  func.func @_embed_ln_fc1_kernel(%arg0: i32, %arg1: memref<16x32xf32, #tpu.memory_space<vmem>>, %arg2: memref<1x32xf32, #tpu.memory_space<vmem>>, %arg3: memref<1x32xf32, #tpu.memory_space<vmem>>, %arg4: memref<32x16xbf16, #tpu.memory_space<vmem>>, %arg5: memref<1x16xf32, #tpu.memory_space<vmem>>, %arg6: memref<16x32xf32, #tpu.memory_space<vmem>>, %arg7: memref<16x16xf32, #tpu.memory_space<vmem>>) attributes {dimension_semantics = [#tpu.dimension_semantics<parallel>], iteration_bounds = array<i64: 1>, scalar_prefetch = 0 : i64, scratch_operands = 0 : i64, tpu.core_type = #tpu.core_type<tc>, window_params = [{transform_indices = @transform_0, window_bounds = array<i64: 16, 32>}, {pipeline_mode = #tpu.pipeline_mode<synchronous>, transform_indices = @transform_1, window_bounds = array<i64: 1, 32>}, {pipeline_mode = #tpu.pipeline_mode<synchronous>, transform_indices = @transform_2, window_bounds = array<i64: 1, 32>}, {pipeline_mode = #tpu.pipeline_mode<synchronous>, transform_indices = @transform_3, window_bounds = array<i64: 32, 16>}, {pipeline_mode = #tpu.pipeline_mode<synchronous>, transform_indices = @transform_4, window_bounds = array<i64: 1, 16>}, {transform_indices = @transform_5, window_bounds = array<i64: 16, 32>}, {transform_indices = @transform_6, window_bounds = array<i64: 16, 16>}]} {
    %c0 = arith.constant 0 : index
    %c0_0 = arith.constant 0 : index
    %0 = vector.load %arg1[%c0, %c0_0] : memref<16x32xf32, #tpu.memory_space<vmem>>, vector<16x32xf32>
    %c0_1 = arith.constant 0 : index
    %c0_2 = arith.constant 0 : index
    %1 = vector.load %arg2[%c0_1, %c0_2] : memref<1x32xf32, #tpu.memory_space<vmem>>, vector<1x32xf32>
    %c0_3 = arith.constant 0 : index
    %c0_4 = arith.constant 0 : index
    %2 = vector.load %arg3[%c0_3, %c0_4] : memref<1x32xf32, #tpu.memory_space<vmem>>, vector<1x32xf32>
    %cst = arith.constant dense<0.000000e+00> : vector<16xf32>
    %3 = vector.multi_reduction <add>, %0, %cst [1] : vector<16x32xf32> to vector<16xf32>
    %4 = vector.shape_cast %3 : vector<16xf32> to vector<16x1xf32>
    %cst_5 = arith.constant 3.200000e+01 : f32
    %5 = vector.broadcast %cst_5 : f32 to vector<16x1xf32>
    %6 = arith.divf %4, %5 : vector<16x1xf32>
    %7 = vector.broadcast %6 : vector<16x1xf32> to vector<16x32xf32>
    %8 = arith.subf %0, %7 : vector<16x32xf32>
    %9 = arith.mulf %8, %8 : vector<16x32xf32>
    %cst_6 = arith.constant dense<0.000000e+00> : vector<16xf32>
    %10 = vector.multi_reduction <add>, %9, %cst_6 [1] : vector<16x32xf32> to vector<16xf32>
    %11 = vector.shape_cast %10 : vector<16xf32> to vector<16x1xf32>
    %cst_7 = arith.constant 3.200000e+01 : f32
    %12 = vector.broadcast %cst_7 : f32 to vector<16x1xf32>
    %13 = arith.divf %11, %12 : vector<16x1xf32>
    %cst_8 = arith.constant 9.99999974E-6 : f32
    %14 = vector.broadcast %cst_8 : f32 to vector<16x1xf32>
    %15 = arith.addf %13, %14 : vector<16x1xf32>
    %16 = math.rsqrt %15 : vector<16x1xf32>
    %17 = vector.broadcast %16 : vector<16x1xf32> to vector<16x32xf32>
    %18 = arith.mulf %8, %17 : vector<16x32xf32>
    %19 = vector.broadcast %1 : vector<1x32xf32> to vector<16x32xf32>
    %20 = arith.mulf %18, %19 : vector<16x32xf32>
    %21 = vector.broadcast %2 : vector<1x32xf32> to vector<16x32xf32>
    %22 = arith.addf %20, %21 : vector<16x32xf32>
    %c0_9 = arith.constant 0 : index
    %c0_10 = arith.constant 0 : index
    %23 = vector.load %arg6[%c0_9, %c0_10] : memref<16x32xf32, #tpu.memory_space<vmem>>, vector<16x32xf32>
    tpu.vector_store %arg6[%c0_9, %c0_10], %22 {strides = array<i32>} : memref<16x32xf32, #tpu.memory_space<vmem>>, vector<16x32xf32>,
    %24 = arith.truncf %22 : vector<16x32xf32> to vector<16x32xbf16>
    %c0_11 = arith.constant 0 : index
    %c0_12 = arith.constant 0 : index
    %25 = vector.load %arg4[%c0_11, %c0_12] : memref<32x16xbf16, #tpu.memory_space<vmem>>, vector<32x16xbf16>
    %cst_13 = arith.constant dense<0.000000e+00> : vector<16x16xf32>
    %26 = tpu.matmul %24, %25, %cst_13 {dimension_numbers = #tpu.dot_dimension_numbers<[1], [0], [0], [1], [0, 0, 1, 1], [], []>} : vector<16x32xbf16>, vector<32x16xbf16>, vector<16x16xf32> -> vector<16x16xf32>
    %c0_14 = arith.constant 0 : index
    %c0_15 = arith.constant 0 : index
    %27 = vector.load %arg5[%c0_14, %c0_15] : memref<1x16xf32, #tpu.memory_space<vmem>>, vector<1x16xf32>
    %28 = vector.broadcast %27 : vector<1x16xf32> to vector<16x16xf32>
    %29 = arith.addf %26, %28 : vector<16x16xf32>
    %c0_16 = arith.constant 0 : index
    %c0_17 = arith.constant 0 : index
    %30 = vector.load %arg7[%c0_16, %c0_17] : memref<16x16xf32, #tpu.memory_space<vmem>>, vector<16x16xf32>
    tpu.vector_store %arg7[%c0_16, %c0_17], %29 {strides = array<i32>} : memref<16x16xf32, #tpu.memory_space<vmem>>, vector<16x16xf32>,
    return
  }
  func.func @transform_0(%arg0: i32) -> (i32, i32) {
    %c0_i32 = arith.constant 0 : i32
    %c0_i32_0 = arith.constant 0 : i32
    return %arg0, %c0_i32 : i32, i32
  }
  func.func @transform_1(%arg0: i32) -> (i32, i32) {
    %c0_i32 = arith.constant 0 : i32
    %c0_i32_0 = arith.constant 0 : i32
    %c0_i32_1 = arith.constant 0 : i32
    return %c0_i32, %c0_i32_0 : i32, i32
  }
  func.func @transform_2(%arg0: i32) -> (i32, i32) {
    %c0_i32 = arith.constant 0 : i32
    %c0_i32_0 = arith.constant 0 : i32
    %c0_i32_1 = arith.constant 0 : i32
    return %c0_i32, %c0_i32_0 : i32, i32
  }
  func.func @transform_3(%arg0: i32) -> (i32, i32) {
    %c0_i32 = arith.constant 0 : i32
    %c0_i32_0 = arith.constant 0 : i32
    %c0_i32_1 = arith.constant 0 : i32
    return %c0_i32, %c0_i32_0 : i32, i32
  }
  func.func @transform_4(%arg0: i32) -> (i32, i32) {
    %c0_i32 = arith.constant 0 : i32
    %c0_i32_0 = arith.constant 0 : i32
    %c0_i32_1 = arith.constant 0 : i32
    return %c0_i32, %c0_i32_0 : i32, i32
  }
  func.func @transform_5(%arg0: i32) -> (i32, i32) {
    %c0_i32 = arith.constant 0 : i32
    %c0_i32_0 = arith.constant 0 : i32
    return %arg0, %c0_i32 : i32, i32
  }
  func.func @transform_6(%arg0: i32) -> (i32, i32) {
    %c0_i32 = arith.constant 0 : i32
    %c0_i32_0 = arith.constant 0 : i32
    return %arg0, %c0_i32 : i32, i32
  }
}

module attributes {stable_mosaic.version = 11 : i64} {
  func.func @_conv_res_kernel(%arg0: i32, %arg1: memref<16x16xf32, #tpu.memory_space<vmem>>, %arg2: memref<16x1xf32, #tpu.memory_space<vmem>>, %arg3: memref<16x16xf32, #tpu.memory_space<vmem>>, %arg4: memref<3x16x32xbf16, #tpu.memory_space<vmem>>, %arg5: memref<1x32xf32, #tpu.memory_space<vmem>>, %arg6: memref<1x16xf32, #tpu.memory_space<vmem>>, %arg7: memref<1x16xf32, #tpu.memory_space<vmem>>, %arg8: memref<16x16xf32, #tpu.memory_space<vmem>>) attributes {dimension_semantics = [#tpu.dimension_semantics<parallel>], iteration_bounds = array<i64: 1>, scalar_prefetch = 0 : i64, scratch_operands = 0 : i64, tpu.core_type = #tpu.core_type<tc>, window_params = [{transform_indices = @transform_0, window_bounds = array<i64: 16, 16>}, {transform_indices = @transform_1, window_bounds = array<i64: 16, 1>}, {transform_indices = @transform_2, window_bounds = array<i64: 16, 16>}, {pipeline_mode = #tpu.pipeline_mode<synchronous>, transform_indices = @transform_3, window_bounds = array<i64: 3, 16, 32>}, {pipeline_mode = #tpu.pipeline_mode<synchronous>, transform_indices = @transform_4, window_bounds = array<i64: 1, 32>}, {pipeline_mode = #tpu.pipeline_mode<synchronous>, transform_indices = @transform_5, window_bounds = array<i64: 1, 16>}, {pipeline_mode = #tpu.pipeline_mode<synchronous>, transform_indices = @transform_6, window_bounds = array<i64: 1, 16>}, {transform_indices = @transform_7, window_bounds = array<i64: 16, 16>}]} {
    %c0 = arith.constant 0 : index
    %c0_0 = arith.constant 0 : index
    %0 = vector.load %arg1[%c0, %c0_0] : memref<16x16xf32, #tpu.memory_space<vmem>>, vector<16x16xf32>
    %c0_1 = arith.constant 0 : index
    %c0_2 = arith.constant 0 : index
    %1 = vector.load %arg2[%c0_1, %c0_2] : memref<16x1xf32, #tpu.memory_space<vmem>>, vector<16x1xf32>
    %2 = vector.broadcast %1 : vector<16x1xf32> to vector<16x16xf32>
    %3 = arith.mulf %0, %2 : vector<16x16xf32>
    %4 = tpu.iota {dimensions = array<i32: 0>} : vector<16x16xi32>
    %c8_i32 = arith.constant 8 : i32
    %c0_i32 = arith.constant 0 : i32
    %5 = arith.cmpi eq, %c8_i32, %c0_i32 : i32
    %c1_i32 = arith.constant 1 : i32
    %6 = arith.select %5, %c1_i32, %c8_i32 : i32
    %7 = vector.broadcast %6 : i32 to vector<16x16xi32>
    %8 = arith.remsi %4, %7 : vector<16x16xi32>
    %c0_i32_3 = arith.constant 0 : i32
    %9 = vector.broadcast %c0_i32_3 : i32 to vector<16x16xi32>
    %10 = arith.cmpi ne, %8, %9 : vector<16x16xi32>
    %c0_i32_4 = arith.constant 0 : i32
    %11 = vector.broadcast %c0_i32_4 : i32 to vector<16x16xi32>
    %12 = arith.cmpi slt, %8, %11 : vector<16x16xi32>
    %c0_i32_5 = arith.constant 0 : i32
    %13 = arith.cmpi slt, %6, %c0_i32_5 : i32
    %14 = vector.broadcast %13 : i1 to vector<16x16xi1>
    %15 = vector.broadcast %14 : vector<16x16xi1> to vector<16x16xi1>
    %16 = arith.xori %12, %15 : vector<16x16xi1>
    %17 = arith.andi %16, %10 : vector<16x16xi1>
    %18 = vector.broadcast %6 : i32 to vector<16x16xi32>
    %19 = arith.addi %8, %18 : vector<16x16xi32>
    %20 = arith.select %17, %19, %8 : vector<16x16xi1>, vector<16x16xi32>
    %c1_i32_6 = arith.constant 1 : i32
    %21 = tpu.dynamic_rotate %3 by %c1_i32_6 dim 0 : vector<16x16xf32>, i32 -> vector<16x16xf32>
    %c-1_i32 = arith.constant -1 : i32
    %22 = vector.broadcast %c-1_i32 : i32 to vector<16x16xi32>
    %23 = arith.addi %20, %22 : vector<16x16xi32>
    %c0_i32_7 = arith.constant 0 : i32
    %24 = vector.broadcast %c0_i32_7 : i32 to vector<16x16xi32>
    %25 = arith.cmpi sge, %23, %24 : vector<16x16xi32>
    %c-1_i32_8 = arith.constant -1 : i32
    %26 = vector.broadcast %c-1_i32_8 : i32 to vector<16x16xi32>
    %27 = arith.addi %20, %26 : vector<16x16xi32>
    %c8_i32_9 = arith.constant 8 : i32
    %28 = vector.broadcast %c8_i32_9 : i32 to vector<16x16xi32>
    %29 = arith.cmpi slt, %27, %28 : vector<16x16xi32>
    %30 = arith.andi %25, %29 : vector<16x16xi1>
    %cst = arith.constant 0.000000e+00 : f32
    %31 = vector.broadcast %cst : f32 to vector<16x16xf32>
    %32 = arith.select %30, %21, %31 : vector<16x16xi1>, vector<16x16xf32>
    %33 = arith.truncf %32 : vector<16x16xf32> to vector<16x16xbf16>
    %c0_10 = arith.constant 0 : index
    %c0_11 = arith.constant 0 : index
    %c0_12 = arith.constant 0 : index
    %34 = vector.load %arg4[%c0_10, %c0_11, %c0_12] : memref<3x16x32xbf16, #tpu.memory_space<vmem>>, vector<1x16x32xbf16>
    %35 = vector.shape_cast %34 : vector<1x16x32xbf16> to vector<16x32xbf16>
    %cst_13 = arith.constant dense<0.000000e+00> : vector<16x32xf32>
    %36 = tpu.matmul %33, %35, %cst_13 {dimension_numbers = #tpu.dot_dimension_numbers<[1], [0], [0], [1], [0, 0, 1, 1], [], []>} : vector<16x16xbf16>, vector<16x32xbf16>, vector<16x32xf32> -> vector<16x32xf32>
    %37 = arith.truncf %3 : vector<16x16xf32> to vector<16x16xbf16>
    %c1 = arith.constant 1 : index
    %c0_14 = arith.constant 0 : index
    %c0_15 = arith.constant 0 : index
    %38 = vector.load %arg4[%c1, %c0_14, %c0_15] : memref<3x16x32xbf16, #tpu.memory_space<vmem>>, vector<1x16x32xbf16>
    %39 = vector.shape_cast %38 : vector<1x16x32xbf16> to vector<16x32xbf16>
    %cst_16 = arith.constant dense<0.000000e+00> : vector<16x32xf32>
    %40 = tpu.matmul %37, %39, %cst_16 {dimension_numbers = #tpu.dot_dimension_numbers<[1], [0], [0], [1], [0, 0, 1, 1], [], []>} : vector<16x16xbf16>, vector<16x32xbf16>, vector<16x32xf32> -> vector<16x32xf32>
    %41 = arith.addf %36, %40 : vector<16x32xf32>
    %c15_i32 = arith.constant 15 : i32
    %42 = tpu.dynamic_rotate %3 by %c15_i32 dim 0 : vector<16x16xf32>, i32 -> vector<16x16xf32>
    %c1_i32_17 = arith.constant 1 : i32
    %43 = vector.broadcast %c1_i32_17 : i32 to vector<16x16xi32>
    %44 = arith.addi %20, %43 : vector<16x16xi32>
    %c0_i32_18 = arith.constant 0 : i32
    %45 = vector.broadcast %c0_i32_18 : i32 to vector<16x16xi32>
    %46 = arith.cmpi sge, %44, %45 : vector<16x16xi32>
    %c1_i32_19 = arith.constant 1 : i32
    %47 = vector.broadcast %c1_i32_19 : i32 to vector<16x16xi32>
    %48 = arith.addi %20, %47 : vector<16x16xi32>
    %c8_i32_20 = arith.constant 8 : i32
    %49 = vector.broadcast %c8_i32_20 : i32 to vector<16x16xi32>
    %50 = arith.cmpi slt, %48, %49 : vector<16x16xi32>
    %51 = arith.andi %46, %50 : vector<16x16xi1>
    %cst_21 = arith.constant 0.000000e+00 : f32
    %52 = vector.broadcast %cst_21 : f32 to vector<16x16xf32>
    %53 = arith.select %51, %42, %52 : vector<16x16xi1>, vector<16x16xf32>
    %54 = arith.truncf %53 : vector<16x16xf32> to vector<16x16xbf16>
    %c2 = arith.constant 2 : index
    %c0_22 = arith.constant 0 : index
    %c0_23 = arith.constant 0 : index
    %55 = vector.load %arg4[%c2, %c0_22, %c0_23] : memref<3x16x32xbf16, #tpu.memory_space<vmem>>, vector<1x16x32xbf16>
    %56 = vector.shape_cast %55 : vector<1x16x32xbf16> to vector<16x32xbf16>
    %cst_24 = arith.constant dense<0.000000e+00> : vector<16x32xf32>
    %57 = tpu.matmul %54, %56, %cst_24 {dimension_numbers = #tpu.dot_dimension_numbers<[1], [0], [0], [1], [0, 0, 1, 1], [], []>} : vector<16x16xbf16>, vector<16x32xbf16>, vector<16x32xf32> -> vector<16x32xf32>
    %58 = arith.addf %41, %57 : vector<16x32xf32>
    %c0_25 = arith.constant 0 : index
    %c0_26 = arith.constant 0 : index
    %59 = vector.load %arg5[%c0_25, %c0_26] : memref<1x32xf32, #tpu.memory_space<vmem>>, vector<1x32xf32>
    %60 = vector.broadcast %59 : vector<1x32xf32> to vector<16x32xf32>
    %61 = arith.addf %58, %60 : vector<16x32xf32>
    %62 = vector.extract_strided_slice %61 {offsets = [0, 0], sizes = [16, 16], strides = [1, 1]} : vector<16x32xf32> to vector<16x16xf32>
    %63 = vector.extract_strided_slice %61 {offsets = [0, 16], sizes = [16, 16], strides = [1, 1]} : vector<16x32xf32> to vector<16x16xf32>
    %64 = arith.negf %63 : vector<16x16xf32>
    %65 = math.exp %64 : vector<16x16xf32>
    %cst_27 = arith.constant 1.000000e+00 : f32
    %66 = vector.broadcast %cst_27 : f32 to vector<16x16xf32>
    %67 = arith.addf %66, %65 : vector<16x16xf32>
    %68 = arith.divf %66, %67 : vector<16x16xf32>
    %69 = arith.mulf %62, %68 : vector<16x16xf32>
    %c0_28 = arith.constant 0 : index
    %c0_29 = arith.constant 0 : index
    %70 = vector.load %arg3[%c0_28, %c0_29] : memref<16x16xf32, #tpu.memory_space<vmem>>, vector<16x16xf32>
    %71 = arith.addf %69, %70 : vector<16x16xf32>
    %cst_30 = arith.constant 0.707106769 : f32
    %72 = vector.broadcast %cst_30 : f32 to vector<16x16xf32>
    %73 = arith.mulf %71, %72 : vector<16x16xf32>
    %c0_31 = arith.constant 0 : index
    %c0_32 = arith.constant 0 : index
    %74 = vector.load %arg6[%c0_31, %c0_32] : memref<1x16xf32, #tpu.memory_space<vmem>>, vector<1x16xf32>
    %c0_33 = arith.constant 0 : index
    %c0_34 = arith.constant 0 : index
    %75 = vector.load %arg7[%c0_33, %c0_34] : memref<1x16xf32, #tpu.memory_space<vmem>>, vector<1x16xf32>
    %cst_35 = arith.constant dense<0.000000e+00> : vector<16xf32>
    %76 = vector.multi_reduction <add>, %73, %cst_35 [1] : vector<16x16xf32> to vector<16xf32>
    %77 = vector.shape_cast %76 : vector<16xf32> to vector<16x1xf32>
    %cst_36 = arith.constant 1.600000e+01 : f32
    %78 = vector.broadcast %cst_36 : f32 to vector<16x1xf32>
    %79 = arith.divf %77, %78 : vector<16x1xf32>
    %80 = vector.broadcast %79 : vector<16x1xf32> to vector<16x16xf32>
    %81 = arith.subf %73, %80 : vector<16x16xf32>
    %82 = arith.mulf %81, %81 : vector<16x16xf32>
    %cst_37 = arith.constant dense<0.000000e+00> : vector<16xf32>
    %83 = vector.multi_reduction <add>, %82, %cst_37 [1] : vector<16x16xf32> to vector<16xf32>
    %84 = vector.shape_cast %83 : vector<16xf32> to vector<16x1xf32>
    %cst_38 = arith.constant 1.600000e+01 : f32
    %85 = vector.broadcast %cst_38 : f32 to vector<16x1xf32>
    %86 = arith.divf %84, %85 : vector<16x1xf32>
    %cst_39 = arith.constant 9.99999974E-6 : f32
    %87 = vector.broadcast %cst_39 : f32 to vector<16x1xf32>
    %88 = arith.addf %86, %87 : vector<16x1xf32>
    %89 = math.rsqrt %88 : vector<16x1xf32>
    %90 = vector.broadcast %89 : vector<16x1xf32> to vector<16x16xf32>
    %91 = arith.mulf %81, %90 : vector<16x16xf32>
    %92 = vector.broadcast %74 : vector<1x16xf32> to vector<16x16xf32>
    %93 = arith.mulf %91, %92 : vector<16x16xf32>
    %94 = vector.broadcast %75 : vector<1x16xf32> to vector<16x16xf32>
    %95 = arith.addf %93, %94 : vector<16x16xf32>
    %c0_40 = arith.constant 0 : index
    %c0_41 = arith.constant 0 : index
    %96 = vector.load %arg8[%c0_40, %c0_41] : memref<16x16xf32, #tpu.memory_space<vmem>>, vector<16x16xf32>
    tpu.vector_store %arg8[%c0_40, %c0_41], %95 {strides = array<i32>} : memref<16x16xf32, #tpu.memory_space<vmem>>, vector<16x16xf32>,
    return
  }
  func.func @transform_0(%arg0: i32) -> (i32, i32) {
    %c0_i32 = arith.constant 0 : i32
    %c0_i32_0 = arith.constant 0 : i32
    return %arg0, %c0_i32 : i32, i32
  }
  func.func @transform_1(%arg0: i32) -> (i32, i32) {
    %c0_i32 = arith.constant 0 : i32
    %c0_i32_0 = arith.constant 0 : i32
    return %arg0, %c0_i32 : i32, i32
  }
  func.func @transform_2(%arg0: i32) -> (i32, i32) {
    %c0_i32 = arith.constant 0 : i32
    %c0_i32_0 = arith.constant 0 : i32
    return %arg0, %c0_i32 : i32, i32
  }
  func.func @transform_3(%arg0: i32) -> (i32, i32, i32) {
    %c0_i32 = arith.constant 0 : i32
    %c0_i32_0 = arith.constant 0 : i32
    %c0_i32_1 = arith.constant 0 : i32
    %c0_i32_2 = arith.constant 0 : i32
    return %c0_i32, %c0_i32_0, %c0_i32_1 : i32, i32, i32
  }
  func.func @transform_4(%arg0: i32) -> (i32, i32) {
    %c0_i32 = arith.constant 0 : i32
    %c0_i32_0 = arith.constant 0 : i32
    %c0_i32_1 = arith.constant 0 : i32
    return %c0_i32, %c0_i32_0 : i32, i32
  }
  func.func @transform_5(%arg0: i32) -> (i32, i32) {
    %c0_i32 = arith.constant 0 : i32
    %c0_i32_0 = arith.constant 0 : i32
    %c0_i32_1 = arith.constant 0 : i32
    return %c0_i32, %c0_i32_0 : i32, i32
  }
  func.func @transform_6(%arg0: i32) -> (i32, i32) {
    %c0_i32 = arith.constant 0 : i32
    %c0_i32_0 = arith.constant 0 : i32
    %c0_i32_1 = arith.constant 0 : i32
    return %c0_i32, %c0_i32_0 : i32, i32
  }
  func.func @transform_7(%arg0: i32) -> (i32, i32) {
    %c0_i32 = arith.constant 0 : i32
    %c0_i32_0 = arith.constant 0 : i32
    return %arg0, %c0_i32 : i32, i32
  }
}

module attributes {stable_mosaic.version = 11 : i64} {
  func.func @_final_kernel(%arg0: i32, %arg1: memref<16x16xf32, #tpu.memory_space<vmem>>, %arg2: memref<16x32xbf16, #tpu.memory_space<vmem>>, %arg3: memref<1x32xf32, #tpu.memory_space<vmem>>, %arg4: memref<16x1xf32, #tpu.memory_space<vmem>>, %arg5: memref<16x32xf32, #tpu.memory_space<vmem>>, %arg6: memref<16x32xf32, #tpu.memory_space<vmem>>, %arg7: memref<16x32xf32, #tpu.memory_space<vmem>>) attributes {dimension_semantics = [#tpu.dimension_semantics<parallel>], iteration_bounds = array<i64: 1>, scalar_prefetch = 0 : i64, scratch_operands = 0 : i64, tpu.core_type = #tpu.core_type<tc>, window_params = [{transform_indices = @transform_0, window_bounds = array<i64: 16, 16>}, {pipeline_mode = #tpu.pipeline_mode<synchronous>, transform_indices = @transform_1, window_bounds = array<i64: 16, 32>}, {pipeline_mode = #tpu.pipeline_mode<synchronous>, transform_indices = @transform_2, window_bounds = array<i64: 1, 32>}, {transform_indices = @transform_3, window_bounds = array<i64: 16, 1>}, {transform_indices = @transform_4, window_bounds = array<i64: 16, 32>}, {transform_indices = @transform_5, window_bounds = array<i64: 16, 32>}, {transform_indices = @transform_6, window_bounds = array<i64: 16, 32>}]} {
    %c0 = arith.constant 0 : index
    %c0_0 = arith.constant 0 : index
    %0 = vector.load %arg1[%c0, %c0_0] : memref<16x16xf32, #tpu.memory_space<vmem>>, vector<16x16xf32>
    %1 = arith.truncf %0 : vector<16x16xf32> to vector<16x16xbf16>
    %c0_1 = arith.constant 0 : index
    %c0_2 = arith.constant 0 : index
    %2 = vector.load %arg2[%c0_1, %c0_2] : memref<16x32xbf16, #tpu.memory_space<vmem>>, vector<16x32xbf16>
    %cst = arith.constant dense<0.000000e+00> : vector<16x32xf32>
    %3 = tpu.matmul %1, %2, %cst {dimension_numbers = #tpu.dot_dimension_numbers<[1], [0], [0], [1], [0, 0, 1, 1], [], []>} : vector<16x16xbf16>, vector<16x32xbf16>, vector<16x32xf32> -> vector<16x32xf32>
    %c0_3 = arith.constant 0 : index
    %c0_4 = arith.constant 0 : index
    %4 = vector.load %arg3[%c0_3, %c0_4] : memref<1x32xf32, #tpu.memory_space<vmem>>, vector<1x32xf32>
    %5 = vector.broadcast %4 : vector<1x32xf32> to vector<16x32xf32>
    %6 = arith.addf %3, %5 : vector<16x32xf32>
    %c0_5 = arith.constant 0 : index
    %c0_6 = arith.constant 0 : index
    %7 = vector.load %arg4[%c0_5, %c0_6] : memref<16x1xf32, #tpu.memory_space<vmem>>, vector<16x1xf32>
    %8 = vector.broadcast %7 : vector<16x1xf32> to vector<16x32xf32>
    %9 = arith.mulf %6, %8 : vector<16x32xf32>
    %c0_7 = arith.constant 0 : index
    %c0_8 = arith.constant 0 : index
    %10 = vector.load %arg6[%c0_7, %c0_8] : memref<16x32xf32, #tpu.memory_space<vmem>>, vector<16x32xf32>
    tpu.vector_store %arg6[%c0_7, %c0_8], %9 {strides = array<i32>} : memref<16x32xf32, #tpu.memory_space<vmem>>, vector<16x32xf32>,
    %c0_9 = arith.constant 0 : index
    %c0_10 = arith.constant 0 : index
    %11 = vector.load %arg5[%c0_9, %c0_10] : memref<16x32xf32, #tpu.memory_space<vmem>>, vector<16x32xf32>
    %12 = arith.addf %9, %11 : vector<16x32xf32>
    %cst_11 = arith.constant 0.707106769 : f32
    %13 = vector.broadcast %cst_11 : f32 to vector<16x32xf32>
    %14 = arith.mulf %12, %13 : vector<16x32xf32>
    %c0_12 = arith.constant 0 : index
    %c0_13 = arith.constant 0 : index
    %15 = vector.load %arg7[%c0_12, %c0_13] : memref<16x32xf32, #tpu.memory_space<vmem>>, vector<16x32xf32>
    tpu.vector_store %arg7[%c0_12, %c0_13], %14 {strides = array<i32>} : memref<16x32xf32, #tpu.memory_space<vmem>>, vector<16x32xf32>,
    return
  }
  func.func @transform_0(%arg0: i32) -> (i32, i32) {
    %c0_i32 = arith.constant 0 : i32
    %c0_i32_0 = arith.constant 0 : i32
    return %arg0, %c0_i32 : i32, i32
  }
  func.func @transform_1(%arg0: i32) -> (i32, i32) {
    %c0_i32 = arith.constant 0 : i32
    %c0_i32_0 = arith.constant 0 : i32
    %c0_i32_1 = arith.constant 0 : i32
    return %c0_i32, %c0_i32_0 : i32, i32
  }
  func.func @transform_2(%arg0: i32) -> (i32, i32) {
    %c0_i32 = arith.constant 0 : i32
    %c0_i32_0 = arith.constant 0 : i32
    %c0_i32_1 = arith.constant 0 : i32
    return %c0_i32, %c0_i32_0 : i32, i32
  }
  func.func @transform_3(%arg0: i32) -> (i32, i32) {
    %c0_i32 = arith.constant 0 : i32
    %c0_i32_0 = arith.constant 0 : i32
    return %arg0, %c0_i32 : i32, i32
  }
  func.func @transform_4(%arg0: i32) -> (i32, i32) {
    %c0_i32 = arith.constant 0 : i32
    %c0_i32_0 = arith.constant 0 : i32
    return %arg0, %c0_i32 : i32, i32
  }
  func.func @transform_5(%arg0: i32) -> (i32, i32) {
    %c0_i32 = arith.constant 0 : i32
    %c0_i32_0 = arith.constant 0 : i32
    return %arg0, %c0_i32 : i32, i32
  }
  func.func @transform_6(%arg0: i32) -> (i32, i32) {
    %c0_i32 = arith.constant 0 : i32
    %c0_i32_0 = arith.constant 0 : i32
    return %arg0, %c0_i32 : i32, i32
  }
}

module attributes {stable_mosaic.version = 11 : i64} {
  func.func @_conv_attn_res_kernel(%arg0: i32, %arg1: memref<1x8x16xf32, #tpu.memory_space<vmem>>, %arg2: memref<1x8x1xf32, #tpu.memory_space<vmem>>, %arg3: memref<1x1x8xf32, #tpu.memory_space<vmem>>, %arg4: memref<1x8x16xf32, #tpu.memory_space<vmem>>, %arg5: memref<3x16x32xbf16, #tpu.memory_space<vmem>>, %arg6: memref<1x32xf32, #tpu.memory_space<vmem>>, %arg7: memref<16x16xbf16, #tpu.memory_space<vmem>>, %arg8: memref<1x16xf32, #tpu.memory_space<vmem>>, %arg9: memref<16x16xbf16, #tpu.memory_space<vmem>>, %arg10: memref<1x16xf32, #tpu.memory_space<vmem>>, %arg11: memref<1x16xf32, #tpu.memory_space<vmem>>, %arg12: memref<1x16xf32, #tpu.memory_space<vmem>>, %arg13: memref<1x8x16xf32, #tpu.memory_space<vmem>>) attributes {dimension_semantics = [#tpu.dimension_semantics<parallel>], iteration_bounds = array<i64: 2>, scalar_prefetch = 0 : i64, scratch_operands = 0 : i64, tpu.core_type = #tpu.core_type<tc>, window_params = [{transform_indices = @transform_0, window_bounds = array<i64: 1, 8, 16>}, {transform_indices = @transform_1, window_bounds = array<i64: 1, 8, 1>}, {transform_indices = @transform_2, window_bounds = array<i64: 1, 1, 8>}, {transform_indices = @transform_3, window_bounds = array<i64: 1, 8, 16>}, {pipeline_mode = #tpu.pipeline_mode<synchronous>, transform_indices = @transform_4, window_bounds = array<i64: 3, 16, 32>}, {pipeline_mode = #tpu.pipeline_mode<synchronous>, transform_indices = @transform_5, window_bounds = array<i64: 1, 32>}, {pipeline_mode = #tpu.pipeline_mode<synchronous>, transform_indices = @transform_6, window_bounds = array<i64: 16, 16>}, {pipeline_mode = #tpu.pipeline_mode<synchronous>, transform_indices = @transform_7, window_bounds = array<i64: 1, 16>}, {pipeline_mode = #tpu.pipeline_mode<synchronous>, transform_indices = @transform_8, window_bounds = array<i64: 16, 16>}, {pipeline_mode = #tpu.pipeline_mode<synchronous>, transform_indices = @transform_9, window_bounds = array<i64: 1, 16>}, {pipeline_mode = #tpu.pipeline_mode<synchronous>, transform_indices = @transform_10, window_bounds = array<i64: 1, 16>}, {pipeline_mode = #tpu.pipeline_mode<synchronous>, transform_indices = @transform_11, window_bounds = array<i64: 1, 16>}, {transform_indices = @transform_12, window_bounds = array<i64: 1, 8, 16>}]} {
    %c0 = arith.constant 0 : index
    %c0_0 = arith.constant 0 : index
    %c0_1 = arith.constant 0 : index
    %0 = vector.load %arg1[%c0, %c0_0, %c0_1] : memref<1x8x16xf32, #tpu.memory_space<vmem>>, vector<1x8x16xf32>
    %1 = vector.shape_cast %0 : vector<1x8x16xf32> to vector<8x16xf32>
    %c0_2 = arith.constant 0 : index
    %c0_3 = arith.constant 0 : index
    %c0_4 = arith.constant 0 : index
    %2 = vector.load %arg2[%c0_2, %c0_3, %c0_4] : memref<1x8x1xf32, #tpu.memory_space<vmem>>, vector<1x8x1xf32>
    %3 = vector.shape_cast %2 : vector<1x8x1xf32> to vector<8x1xf32>
    %4 = vector.broadcast %3 : vector<8x1xf32> to vector<8x16xf32>
    %5 = arith.mulf %1, %4 : vector<8x16xf32>
    %6 = tpu.iota {dimensions = array<i32: 0>} : vector<8x16xi32>
    %c8_i32 = arith.constant 8 : i32
    %c0_i32 = arith.constant 0 : i32
    %7 = arith.cmpi eq, %c8_i32, %c0_i32 : i32
    %c1_i32 = arith.constant 1 : i32
    %8 = arith.select %7, %c1_i32, %c8_i32 : i32
    %9 = vector.broadcast %8 : i32 to vector<8x16xi32>
    %10 = arith.remsi %6, %9 : vector<8x16xi32>
    %c0_i32_5 = arith.constant 0 : i32
    %11 = vector.broadcast %c0_i32_5 : i32 to vector<8x16xi32>
    %12 = arith.cmpi ne, %10, %11 : vector<8x16xi32>
    %c0_i32_6 = arith.constant 0 : i32
    %13 = vector.broadcast %c0_i32_6 : i32 to vector<8x16xi32>
    %14 = arith.cmpi slt, %10, %13 : vector<8x16xi32>
    %c0_i32_7 = arith.constant 0 : i32
    %15 = arith.cmpi slt, %8, %c0_i32_7 : i32
    %16 = vector.broadcast %15 : i1 to vector<8x16xi1>
    %17 = vector.broadcast %16 : vector<8x16xi1> to vector<8x16xi1>
    %18 = arith.xori %14, %17 : vector<8x16xi1>
    %19 = arith.andi %18, %12 : vector<8x16xi1>
    %20 = vector.broadcast %8 : i32 to vector<8x16xi32>
    %21 = arith.addi %10, %20 : vector<8x16xi32>
    %22 = arith.select %19, %21, %10 : vector<8x16xi1>, vector<8x16xi32>
    %c1_i32_8 = arith.constant 1 : i32
    %23 = tpu.dynamic_rotate %5 by %c1_i32_8 dim 0 : vector<8x16xf32>, i32 -> vector<8x16xf32>
    %c-1_i32 = arith.constant -1 : i32
    %24 = vector.broadcast %c-1_i32 : i32 to vector<8x16xi32>
    %25 = arith.addi %22, %24 : vector<8x16xi32>
    %c0_i32_9 = arith.constant 0 : i32
    %26 = vector.broadcast %c0_i32_9 : i32 to vector<8x16xi32>
    %27 = arith.cmpi sge, %25, %26 : vector<8x16xi32>
    %c-1_i32_10 = arith.constant -1 : i32
    %28 = vector.broadcast %c-1_i32_10 : i32 to vector<8x16xi32>
    %29 = arith.addi %22, %28 : vector<8x16xi32>
    %c8_i32_11 = arith.constant 8 : i32
    %30 = vector.broadcast %c8_i32_11 : i32 to vector<8x16xi32>
    %31 = arith.cmpi slt, %29, %30 : vector<8x16xi32>
    %32 = arith.andi %27, %31 : vector<8x16xi1>
    %cst = arith.constant 0.000000e+00 : f32
    %33 = vector.broadcast %cst : f32 to vector<8x16xf32>
    %34 = arith.select %32, %23, %33 : vector<8x16xi1>, vector<8x16xf32>
    %35 = arith.truncf %34 : vector<8x16xf32> to vector<8x16xbf16>
    %c0_12 = arith.constant 0 : index
    %c0_13 = arith.constant 0 : index
    %c0_14 = arith.constant 0 : index
    %36 = vector.load %arg5[%c0_12, %c0_13, %c0_14] : memref<3x16x32xbf16, #tpu.memory_space<vmem>>, vector<1x16x32xbf16>
    %37 = vector.shape_cast %36 : vector<1x16x32xbf16> to vector<16x32xbf16>
    %cst_15 = arith.constant dense<0.000000e+00> : vector<8x32xf32>
    %38 = tpu.matmul %35, %37, %cst_15 {dimension_numbers = #tpu.dot_dimension_numbers<[1], [0], [0], [1], [0, 0, 1, 1], [], []>} : vector<8x16xbf16>, vector<16x32xbf16>, vector<8x32xf32> -> vector<8x32xf32>
    %39 = arith.truncf %5 : vector<8x16xf32> to vector<8x16xbf16>
    %c1 = arith.constant 1 : index
    %c0_16 = arith.constant 0 : index
    %c0_17 = arith.constant 0 : index
    %40 = vector.load %arg5[%c1, %c0_16, %c0_17] : memref<3x16x32xbf16, #tpu.memory_space<vmem>>, vector<1x16x32xbf16>
    %41 = vector.shape_cast %40 : vector<1x16x32xbf16> to vector<16x32xbf16>
    %cst_18 = arith.constant dense<0.000000e+00> : vector<8x32xf32>
    %42 = tpu.matmul %39, %41, %cst_18 {dimension_numbers = #tpu.dot_dimension_numbers<[1], [0], [0], [1], [0, 0, 1, 1], [], []>} : vector<8x16xbf16>, vector<16x32xbf16>, vector<8x32xf32> -> vector<8x32xf32>
    %43 = arith.addf %38, %42 : vector<8x32xf32>
    %c7_i32 = arith.constant 7 : i32
    %44 = tpu.dynamic_rotate %5 by %c7_i32 dim 0 : vector<8x16xf32>, i32 -> vector<8x16xf32>
    %c1_i32_19 = arith.constant 1 : i32
    %45 = vector.broadcast %c1_i32_19 : i32 to vector<8x16xi32>
    %46 = arith.addi %22, %45 : vector<8x16xi32>
    %c0_i32_20 = arith.constant 0 : i32
    %47 = vector.broadcast %c0_i32_20 : i32 to vector<8x16xi32>
    %48 = arith.cmpi sge, %46, %47 : vector<8x16xi32>
    %c1_i32_21 = arith.constant 1 : i32
    %49 = vector.broadcast %c1_i32_21 : i32 to vector<8x16xi32>
    %50 = arith.addi %22, %49 : vector<8x16xi32>
    %c8_i32_22 = arith.constant 8 : i32
    %51 = vector.broadcast %c8_i32_22 : i32 to vector<8x16xi32>
    %52 = arith.cmpi slt, %50, %51 : vector<8x16xi32>
    %53 = arith.andi %48, %52 : vector<8x16xi1>
    %cst_23 = arith.constant 0.000000e+00 : f32
    %54 = vector.broadcast %cst_23 : f32 to vector<8x16xf32>
    %55 = arith.select %53, %44, %54 : vector<8x16xi1>, vector<8x16xf32>
    %56 = arith.truncf %55 : vector<8x16xf32> to vector<8x16xbf16>
    %c2 = arith.constant 2 : index
    %c0_24 = arith.constant 0 : index
    %c0_25 = arith.constant 0 : index
    %57 = vector.load %arg5[%c2, %c0_24, %c0_25] : memref<3x16x32xbf16, #tpu.memory_space<vmem>>, vector<1x16x32xbf16>
    %58 = vector.shape_cast %57 : vector<1x16x32xbf16> to vector<16x32xbf16>
    %cst_26 = arith.constant dense<0.000000e+00> : vector<8x32xf32>
    %59 = tpu.matmul %56, %58, %cst_26 {dimension_numbers = #tpu.dot_dimension_numbers<[1], [0], [0], [1], [0, 0, 1, 1], [], []>} : vector<8x16xbf16>, vector<16x32xbf16>, vector<8x32xf32> -> vector<8x32xf32>
    %60 = arith.addf %43, %59 : vector<8x32xf32>
    %c0_27 = arith.constant 0 : index
    %c0_28 = arith.constant 0 : index
    %61 = vector.load %arg6[%c0_27, %c0_28] : memref<1x32xf32, #tpu.memory_space<vmem>>, vector<1x32xf32>
    %62 = vector.broadcast %61 : vector<1x32xf32> to vector<8x32xf32>
    %63 = arith.addf %60, %62 : vector<8x32xf32>
    %64 = vector.extract_strided_slice %63 {offsets = [0, 0], sizes = [8, 16], strides = [1, 1]} : vector<8x32xf32> to vector<8x16xf32>
    %65 = vector.extract_strided_slice %63 {offsets = [0, 16], sizes = [8, 16], strides = [1, 1]} : vector<8x32xf32> to vector<8x16xf32>
    %66 = arith.negf %65 : vector<8x16xf32>
    %67 = math.exp %66 : vector<8x16xf32>
    %cst_29 = arith.constant 1.000000e+00 : f32
    %68 = vector.broadcast %cst_29 : f32 to vector<8x16xf32>
    %69 = arith.addf %68, %67 : vector<8x16xf32>
    %70 = arith.divf %68, %69 : vector<8x16xf32>
    %71 = arith.mulf %64, %70 : vector<8x16xf32>
    %72 = arith.truncf %71 : vector<8x16xf32> to vector<8x16xbf16>
    %c0_30 = arith.constant 0 : index
    %c0_31 = arith.constant 0 : index
    %73 = vector.load %arg7[%c0_30, %c0_31] : memref<16x16xbf16, #tpu.memory_space<vmem>>, vector<16x16xbf16>
    %cst_32 = arith.constant dense<0.000000e+00> : vector<8x16xf32>
    %74 = tpu.matmul %72, %73, %cst_32 {dimension_numbers = #tpu.dot_dimension_numbers<[1], [0], [0], [1], [0, 0, 1, 1], [], []>} : vector<8x16xbf16>, vector<16x16xbf16>, vector<8x16xf32> -> vector<8x16xf32>
    %c0_33 = arith.constant 0 : index
    %c0_34 = arith.constant 0 : index
    %75 = vector.load %arg8[%c0_33, %c0_34] : memref<1x16xf32, #tpu.memory_space<vmem>>, vector<1x16xf32>
    %76 = vector.broadcast %75 : vector<1x16xf32> to vector<8x16xf32>
    %77 = arith.addf %74, %76 : vector<8x16xf32>
    %78 = arith.addf %77, %5 : vector<8x16xf32>
    %cst_35 = arith.constant 0.707106769 : f32
    %79 = vector.broadcast %cst_35 : f32 to vector<8x16xf32>
    %80 = arith.mulf %78, %79 : vector<8x16xf32>
    %81 = arith.truncf %80 : vector<8x16xf32> to vector<8x16xbf16>
    %82 = arith.truncf %71 : vector<8x16xf32> to vector<8x16xbf16>
    %cst_36 = arith.constant dense<0.000000e+00> : vector<8x8xf32>
    %83 = tpu.matmul %81, %82, %cst_36 {dimension_numbers = #tpu.dot_dimension_numbers<[1], [1], [0], [0], [0, 0, 1, 0], [], []>} : vector<8x16xbf16>, vector<8x16xbf16>, vector<8x8xf32> -> vector<8x8xf32>
    %c0_37 = arith.constant 0 : index
    %c0_38 = arith.constant 0 : index
    %c0_39 = arith.constant 0 : index
    %84 = vector.load %arg3[%c0_37, %c0_38, %c0_39] : memref<1x1x8xf32, #tpu.memory_space<vmem>>, vector<1x1x8xf32>
    %85 = vector.shape_cast %84 : vector<1x1x8xf32> to vector<1x8xf32>
    %86 = vector.broadcast %85 : vector<1x8xf32> to vector<8x8xf32>
    %87 = arith.addf %83, %86 : vector<8x8xf32>
    %cst_40 = arith.constant dense<0xFF800000> : vector<8xf32>
    %88 = vector.multi_reduction <maximumf>, %87, %cst_40 [1] : vector<8x8xf32> to vector<8xf32>
    %89 = vector.shape_cast %88 : vector<8xf32> to vector<8x1xf32>
    %90 = vector.broadcast %89 : vector<8x1xf32> to vector<8x8xf32>
    %91 = arith.subf %87, %90 : vector<8x8xf32>
    %92 = math.exp %91 : vector<8x8xf32>
    %cst_41 = arith.constant dense<0.000000e+00> : vector<8xf32>
    %93 = vector.multi_reduction <add>, %92, %cst_41 [1] : vector<8x8xf32> to vector<8xf32>
    %94 = vector.shape_cast %93 : vector<8xf32> to vector<8x1xf32>
    %95 = tpu.reciprocal %94 {approx = true} : vector<8x1xf32> -> vector<8x1xf32>
    %96 = vector.broadcast %95 : vector<8x1xf32> to vector<8x8xf32>
    %97 = arith.mulf %92, %96 : vector<8x8xf32>
    %98 = arith.truncf %97 : vector<8x8xf32> to vector<8x8xbf16>
    %99 = arith.truncf %71 : vector<8x16xf32> to vector<8x16xbf16>
    %cst_42 = arith.constant dense<0.000000e+00> : vector<8x16xf32>
    %100 = tpu.matmul %98, %99, %cst_42 {dimension_numbers = #tpu.dot_dimension_numbers<[1], [0], [0], [1], [0, 0, 1, 1], [], []>} : vector<8x8xbf16>, vector<8x16xbf16>, vector<8x16xf32> -> vector<8x16xf32>
    %cst_43 = arith.constant 2.82842708 : f32
    %101 = vector.broadcast %cst_43 : f32 to vector<8x16xf32>
    %102 = arith.mulf %100, %101 : vector<8x16xf32>
    %103 = arith.truncf %102 : vector<8x16xf32> to vector<8x16xbf16>
    %c0_44 = arith.constant 0 : index
    %c0_45 = arith.constant 0 : index
    %104 = vector.load %arg9[%c0_44, %c0_45] : memref<16x16xbf16, #tpu.memory_space<vmem>>, vector<16x16xbf16>
    %cst_46 = arith.constant dense<0.000000e+00> : vector<8x16xf32>
    %105 = tpu.matmul %103, %104, %cst_46 {dimension_numbers = #tpu.dot_dimension_numbers<[1], [0], [0], [1], [0, 0, 1, 1], [], []>} : vector<8x16xbf16>, vector<16x16xbf16>, vector<8x16xf32> -> vector<8x16xf32>
    %c0_47 = arith.constant 0 : index
    %c0_48 = arith.constant 0 : index
    %106 = vector.load %arg10[%c0_47, %c0_48] : memref<1x16xf32, #tpu.memory_space<vmem>>, vector<1x16xf32>
    %107 = vector.broadcast %106 : vector<1x16xf32> to vector<8x16xf32>
    %108 = arith.addf %105, %107 : vector<8x16xf32>
    %109 = arith.addf %108, %71 : vector<8x16xf32>
    %cst_49 = arith.constant 0.707106769 : f32
    %110 = vector.broadcast %cst_49 : f32 to vector<8x16xf32>
    %111 = arith.mulf %109, %110 : vector<8x16xf32>
    %112 = arith.negf %111 : vector<8x16xf32>
    %113 = math.exp %112 : vector<8x16xf32>
    %cst_50 = arith.constant 1.000000e+00 : f32
    %114 = vector.broadcast %cst_50 : f32 to vector<8x16xf32>
    %115 = arith.addf %114, %113 : vector<8x16xf32>
    %116 = arith.divf %114, %115 : vector<8x16xf32>
    %117 = arith.mulf %71, %116 : vector<8x16xf32>
    %c0_51 = arith.constant 0 : index
    %c0_52 = arith.constant 0 : index
    %c0_53 = arith.constant 0 : index
    %118 = vector.load %arg4[%c0_51, %c0_52, %c0_53] : memref<1x8x16xf32, #tpu.memory_space<vmem>>, vector<1x8x16xf32>
    %119 = vector.shape_cast %118 : vector<1x8x16xf32> to vector<8x16xf32>
    %120 = arith.addf %117, %119 : vector<8x16xf32>
    %cst_54 = arith.constant 0.707106769 : f32
    %121 = vector.broadcast %cst_54 : f32 to vector<8x16xf32>
    %122 = arith.mulf %120, %121 : vector<8x16xf32>
    %c0_55 = arith.constant 0 : index
    %c0_56 = arith.constant 0 : index
    %123 = vector.load %arg11[%c0_55, %c0_56] : memref<1x16xf32, #tpu.memory_space<vmem>>, vector<1x16xf32>
    %c0_57 = arith.constant 0 : index
    %c0_58 = arith.constant 0 : index
    %124 = vector.load %arg12[%c0_57, %c0_58] : memref<1x16xf32, #tpu.memory_space<vmem>>, vector<1x16xf32>
    %cst_59 = arith.constant dense<0.000000e+00> : vector<8xf32>
    %125 = vector.multi_reduction <add>, %122, %cst_59 [1] : vector<8x16xf32> to vector<8xf32>
    %126 = vector.shape_cast %125 : vector<8xf32> to vector<8x1xf32>
    %cst_60 = arith.constant 1.600000e+01 : f32
    %127 = vector.broadcast %cst_60 : f32 to vector<8x1xf32>
    %128 = arith.divf %126, %127 : vector<8x1xf32>
    %129 = vector.broadcast %128 : vector<8x1xf32> to vector<8x16xf32>
    %130 = arith.subf %122, %129 : vector<8x16xf32>
    %131 = arith.mulf %130, %130 : vector<8x16xf32>
    %cst_61 = arith.constant dense<0.000000e+00> : vector<8xf32>
    %132 = vector.multi_reduction <add>, %131, %cst_61 [1] : vector<8x16xf32> to vector<8xf32>
    %133 = vector.shape_cast %132 : vector<8xf32> to vector<8x1xf32>
    %cst_62 = arith.constant 1.600000e+01 : f32
    %134 = vector.broadcast %cst_62 : f32 to vector<8x1xf32>
    %135 = arith.divf %133, %134 : vector<8x1xf32>
    %cst_63 = arith.constant 9.99999974E-6 : f32
    %136 = vector.broadcast %cst_63 : f32 to vector<8x1xf32>
    %137 = arith.addf %135, %136 : vector<8x1xf32>
    %138 = math.rsqrt %137 : vector<8x1xf32>
    %139 = vector.broadcast %138 : vector<8x1xf32> to vector<8x16xf32>
    %140 = arith.mulf %130, %139 : vector<8x16xf32>
    %141 = vector.broadcast %123 : vector<1x16xf32> to vector<8x16xf32>
    %142 = arith.mulf %140, %141 : vector<8x16xf32>
    %143 = vector.broadcast %124 : vector<1x16xf32> to vector<8x16xf32>
    %144 = arith.addf %142, %143 : vector<8x16xf32>
    %c0_64 = arith.constant 0 : index
    %c0_65 = arith.constant 0 : index
    %c0_66 = arith.constant 0 : index
    %145 = vector.load %arg13[%c0_64, %c0_65, %c0_66] : memref<1x8x16xf32, #tpu.memory_space<vmem>>, vector<1x8x16xf32>
    %146 = vector.shape_cast %145 : vector<1x8x16xf32> to vector<8x16xf32>
    %147 = vector.shape_cast %144 : vector<8x16xf32> to vector<1x8x16xf32>
    tpu.vector_store %arg13[%c0_64, %c0_65, %c0_66], %147 {strides = array<i32>} : memref<1x8x16xf32, #tpu.memory_space<vmem>>, vector<1x8x16xf32>,
    return
  }
  func.func @transform_0(%arg0: i32) -> (i32, i32, i32) {
    %c0_i32 = arith.constant 0 : i32
    %c0_i32_0 = arith.constant 0 : i32
    %c0_i32_1 = arith.constant 0 : i32
    return %arg0, %c0_i32, %c0_i32_0 : i32, i32, i32
  }
  func.func @transform_1(%arg0: i32) -> (i32, i32, i32) {
    %c0_i32 = arith.constant 0 : i32
    %c0_i32_0 = arith.constant 0 : i32
    %c0_i32_1 = arith.constant 0 : i32
    return %arg0, %c0_i32, %c0_i32_0 : i32, i32, i32
  }
  func.func @transform_2(%arg0: i32) -> (i32, i32, i32) {
    %c0_i32 = arith.constant 0 : i32
    %c0_i32_0 = arith.constant 0 : i32
    %c0_i32_1 = arith.constant 0 : i32
    return %arg0, %c0_i32, %c0_i32_0 : i32, i32, i32
  }
  func.func @transform_3(%arg0: i32) -> (i32, i32, i32) {
    %c0_i32 = arith.constant 0 : i32
    %c0_i32_0 = arith.constant 0 : i32
    %c0_i32_1 = arith.constant 0 : i32
    return %arg0, %c0_i32, %c0_i32_0 : i32, i32, i32
  }
  func.func @transform_4(%arg0: i32) -> (i32, i32, i32) {
    %c0_i32 = arith.constant 0 : i32
    %c0_i32_0 = arith.constant 0 : i32
    %c0_i32_1 = arith.constant 0 : i32
    %c0_i32_2 = arith.constant 0 : i32
    return %c0_i32, %c0_i32_0, %c0_i32_1 : i32, i32, i32
  }
  func.func @transform_5(%arg0: i32) -> (i32, i32) {
    %c0_i32 = arith.constant 0 : i32
    %c0_i32_0 = arith.constant 0 : i32
    %c0_i32_1 = arith.constant 0 : i32
    return %c0_i32, %c0_i32_0 : i32, i32
  }
  func.func @transform_6(%arg0: i32) -> (i32, i32) {
    %c0_i32 = arith.constant 0 : i32
    %c0_i32_0 = arith.constant 0 : i32
    %c0_i32_1 = arith.constant 0 : i32
    return %c0_i32, %c0_i32_0 : i32, i32
  }
  func.func @transform_7(%arg0: i32) -> (i32, i32) {
    %c0_i32 = arith.constant 0 : i32
    %c0_i32_0 = arith.constant 0 : i32
    %c0_i32_1 = arith.constant 0 : i32
    return %c0_i32, %c0_i32_0 : i32, i32
  }
  func.func @transform_8(%arg0: i32) -> (i32, i32) {
    %c0_i32 = arith.constant 0 : i32
    %c0_i32_0 = arith.constant 0 : i32
    %c0_i32_1 = arith.constant 0 : i32
    return %c0_i32, %c0_i32_0 : i32, i32
  }
  func.func @transform_9(%arg0: i32) -> (i32, i32) {
    %c0_i32 = arith.constant 0 : i32
    %c0_i32_0 = arith.constant 0 : i32
    %c0_i32_1 = arith.constant 0 : i32
    return %c0_i32, %c0_i32_0 : i32, i32
  }
  func.func @transform_10(%arg0: i32) -> (i32, i32) {
    %c0_i32 = arith.constant 0 : i32
    %c0_i32_0 = arith.constant 0 : i32
    %c0_i32_1 = arith.constant 0 : i32
    return %c0_i32, %c0_i32_0 : i32, i32
  }
  func.func @transform_11(%arg0: i32) -> (i32, i32) {
    %c0_i32 = arith.constant 0 : i32
    %c0_i32_0 = arith.constant 0 : i32
    %c0_i32_1 = arith.constant 0 : i32
    return %c0_i32, %c0_i32_0 : i32, i32
  }
  func.func @transform_12(%arg0: i32) -> (i32, i32, i32) {
    %c0_i32 = arith.constant 0 : i32
    %c0_i32_0 = arith.constant 0 : i32
    %c0_i32_1 = arith.constant 0 : i32
    return %arg0, %c0_i32, %c0_i32_0 : i32, i32, i32
  }
}

</mosaic_0001>

<llo_original>
// kernel: forward.5
$region0: #{forward.5}
  #allocation0 [shape = 'u32[]', space=smem, size = 0x4, offset = 0x4, fixed_abs, tag = 'smem constant byte address 0x4 - core index']
  #allocation1 [shape = 'u32[144,128]{1,0:T(1,128)}', space=vmem, size = 0x12000, scoped, tag = 'internal scratch']
  %s0 = inlined_call_operand.vmem [shape: f32[16,32], index: 0, kind: input, shape index: {}]
  %s1 = inlined_call_operand.vmem [shape: f32[1,32], index: 1, kind: input, shape index: {}]
  %s2 = inlined_call_operand.vmem [shape: f32[1,32], index: 2, kind: input, shape index: {}]
  %s3 = inlined_call_operand.vmem [shape: bf16[32,16], index: 3, kind: input, shape index: {}]
  %s4 = inlined_call_operand.vmem [shape: f32[1,16], index: 4, kind: input, shape index: {}]
  %s5 = inlined_call_operand.vmem [shape: f32[16,32], index: 5, kind: output, shape index: {0}]
  %s6 = inlined_call_operand.vmem [shape: f32[16,16], index: 6, kind: output, shape index: {1}]
  %7 = xla_tuple %s5, %s6
  %s8 = sld [smem:[#allocation0]]
  $region38: #{forward.5} parent=0
    _
  %s10 = ssub.s32 1, %s8
  %s11 = scalar_select 0, %s10, %s8
  // Predicated region
  $region2: #{forward.5} parent=0 // pred_check
    _
  $region3: #{forward.5} parent=0 // pred_check_branch
    %13 = sbr.rel (0) target = $region5
  $region4: #{forward.5} parent=0 // pred_region
    _
  $region5: #{forward.5} parent=0 // pred_fallthru
    _
  // Predicated region
  $region6: #{forward.5} parent=0 // pred_check
    _
  $region7: #{forward.5} parent=0 // pred_check_branch
    %15 = sbr.rel (0) target = $region9
  $region8: #{forward.5} parent=0 // pred_region
    _
  $region9: #{forward.5} parent=0 // pred_fallthru
    _
  // Predicated region
  $region10: #{forward.5} parent=0 // pred_check
    _
  $region11: #{forward.5} parent=0 // pred_check_branch
    %17 = sbr.rel (0) target = $region13
  $region12: #{forward.5} parent=0 // pred_region
    _
  $region13: #{forward.5} parent=0 // pred_fallthru
    _
  // Predicated region
  $region14: #{forward.5} parent=0 // pred_check
    _
  $region15: #{forward.5} parent=0 // pred_check_branch
    %19 = sbr.rel (0) target = $region17
  $region16: #{forward.5} parent=0 // pred_region
    _
  $region17: #{forward.5} parent=0 // pred_fallthru
    _
  // Predicated region
  $region18: #{forward.5} parent=0 // pred_check
    _
  $region19: #{forward.5} parent=0 // pred_check_branch
    %21 = sbr.rel (0) target = $region21
  $region20: #{forward.5} parent=0 // pred_region
    _
  $region21: #{forward.5} parent=0 // pred_fallthru
    _
  %v23 = vld [vmem:[%s0] sm:$0xff]
  %v24 = vld [vmem:[%s0 + $0x8] sm:$0xff]
  %v25 = vld [vmem:[%s1] sm:$0x1]
  %v26 = vld [vmem:[%s2] sm:$0x1]
  %vm27 = vcmask 261120
  %v28 = vsel %vm27, %v23, 0.0
  %29 = vadd.xlane.f32.xlu0 %v28
  %v30 = vpop.xlane.xlu0 %29
  %v31 = vsel %vm27, %v24, 0.0
  %32 = vadd.xlane.f32.xlu0 %v31
  %v33 = vpop.xlane.xlu0 %32
  %v34 = vrcp.pop 32.0
  %v35 = vmul.f32 %v30, %v34
  %v36 = vmul.f32 %v33, %v34
  %v37 = vsub.f32 %v23, %v35
  %v38 = vsub.f32 %v24, %v36
  %v39 = vmul.f32 %v37, %v37
  %v40 = vmul.f32 %v38, %v38
  %v41 = vsel %vm27, %v39, 0.0
  %42 = vadd.xlane.f32.xlu0 %v41
  %v43 = vpop.xlane.xlu0 %42
  %v44 = vsel %vm27, %v40, 0.0
  %45 = vadd.xlane.f32.xlu0 %v44
  %v46 = vpop.xlane.xlu0 %45
  %v47 = vmul.f32 %v43, %v34
  %v48 = vmul.f32 %v46, %v34
  %v49 = vadd.f32 %v47, 1e-05
  %v50 = vadd.f32 %v48, 1e-05
  %v51 = vrsqrt.pop %v49
  %v52 = vrsqrt.pop %v50
  %v53 = vmul.f32 %v37, %v51
  %v54 = vmul.f32 %v38, %v52
  %v56 = vlaneseq
  %v57 = vshrl.u32 %v56, 7
  %v58 = vsub.s32 0, %v57
  %v59 = vrot.slane %v25, %v58
  %v61 = vmul.f32 %v53, %v59
  %v62 = vmul.f32 %v54, %v59
  %v64 = vlaneseq
  %v65 = vshrl.u32 %v64, 7
  %v66 = vsub.s32 0, %v65
  %v67 = vrot.slane %v26, %v66
  %v69 = vadd.f32 %v61, %v67
  %v70 = vadd.f32 %v62, %v67
  %71 = vst.msk [vmem:[%s5] sm:$0xff] %vm27, %v69
  %72 = vst.msk [vmem:[%s5 + $0x8] sm:$0xff] %vm27, %v70
  %v73 = vpack.c.bf16 %v70, %v69
  %v74 = vld [vmem:[%s3] sm:$0xf]
  %v75 = vld [vmem:[%s3 + $0x4] sm:$0xf]
  %v76 = vld [vmem:[%s3 + $0x8] sm:$0xf]
  %v77 = vld [vmem:[%s3 + $0xc] sm:$0xf]
  %v78 = vld [vmem:[%s4] sm:$0x1]
  %v80 = vlaneseq
  %v81 = vshrl.u32 %v80, 7
  %v82 = vsub.s32 0, %v81
  %v83 = vrot.slane %v78, %v82
  %v89 = vunpack.c.l.b16 %v74
  %v90 = vunpack.c.l.b16 %v75
  %v91 = vunpack.c.l.b16 %v76
  %v92 = vunpack.c.l.b16 %v77
  %v93 = vpack.c.b16 %v90, %v89
  %v94 = vpack.c.b16 %v92, %v91
  %v98 = vsel %vm27, %v73, 0
  %100 = vmatprep.subr.bf16.mxu0 0
  %101 = vmatpush1.bf16.msra.mxu0 0
  %102 = vmatprep.subr.bf16.mxu0 0
  %103 = vmatpush1.bf16.msra.mxu0 0
  %104 = vmatprep.subr.bf16.mxu0 0
  %105 = vmatpush1.bf16.msra.mxu0 0
  %106 = vmatprep.subr.bf16.mxu0 0
  %107 = vmatpush1.bf16.msra.mxu0 0
  %108 = vmatprep.subr.bf16.mxu0 0
  %109 = vmatpush1.bf16.msra.mxu0 0
  %110 = vmatprep.subr.bf16.mxu0 0
  %111 = vmatpush1.bf16.msra.mxu0 0
  %112 = vmatprep.subr.bf16.mxu0 0
  %113 = vmatpush1.bf16.msra.mxu0 %v94
  %114 = vmatprep.subr.bf16.mxu0 0
  %115 = vmatpush1.bf16.msra.mxu0 %v93
  %116 = vmatprep.subr.bf16.mxu0 0
  %117 = vmatpush2.bf16.msra.mxu0 0
  %118 = vmatprep.subr.bf16.mxu0 0
  %119 = vmatpush2.bf16.msra.mxu0 0
  %120 = vmatprep.subr.bf16.mxu0 0
  %121 = vmatpush2.bf16.msra.mxu0 0
  %122 = vmatprep.subr.bf16.mxu0 0
  %123 = vmatpush2.bf16.msra.mxu0 0
  %124 = vmatprep.subr.bf16.mxu0 0
  %125 = vmatpush2.bf16.msra.mxu0 0
  %126 = vmatprep.subr.bf16.mxu0 0
  %127 = vmatpush2.bf16.msra.mxu0 0
  %128 = vmatprep.subr.bf16.mxu0 0
  %129 = vmatpush2.bf16.msra.mxu0 0
  %130 = vmatprep.subr.bf16.mxu0 0
  %131 = vmatpush2.bf16.msra.mxu0 0
  %132 = vmatprep.mubr.bf16.mxu0 0
  %133 = vmatmul.mubr.bf16.gmra.mxu0 %v98
  %v134 = vpop.f32.mrf.mxu0
  %v135 = vadd.f32 %v83, %v134
  %v136 = vpop.f32.mrf.mxu0
  %v137 = vpop.f32.mrf.mxu0
  %v138 = vadd.f32 %v83, %v137
  %v139 = vpop.f32.mrf.mxu0
  %140 = vdwg.mxu0
  %vm141 = vcmask 130048
  %142 = vst.msk [vmem:[%s6] sm:$0xff] %vm141, %v135
  %143 = vst.msk [vmem:[%s6 + $0x8] sm:$0xff] %vm141, %v138
  // Predicated region
  $region22: #{forward.5} parent=0 // pred_check
    _
  $region23: #{forward.5} parent=0 // pred_check_branch
    %145 = sbr.rel (0) target = $region25
  $region24: #{forward.5} parent=0 // pred_region
    _
  $region25: #{forward.5} parent=0 // pred_fallthru
    _
  // Predicated region
  $region26: #{forward.5} parent=0 // pred_check
    _
  $region27: #{forward.5} parent=0 // pred_check_branch
    %147 = sbr.rel (0) target = $region29
  $region28: #{forward.5} parent=0 // pred_region
    _
  $region29: #{forward.5} parent=0 // pred_fallthru
    _
  // Predicated region
  $region30: #{forward.5} parent=0 // pred_check
    _
  $region31: #{forward.5} parent=0 // pred_check_branch
    %149 = sbr.rel (0) target = $region33
  $region32: #{forward.5} parent=0 // pred_region
    _
  $region33: #{forward.5} parent=0 // pred_fallthru
    _
  // Predicated region
  $region34: #{forward.5} parent=0 // pred_check
    _
  $region35: #{forward.5} parent=0 // pred_check_branch
    %151 = sbr.rel (0) target = $region37
  $region36: #{forward.5} parent=0 // pred_region
    _
  $region37: #{forward.5} parent=0 // pred_fallthru
    _

// kernel: forward.9
$region0: #{forward.9}
  #allocation0 [shape = 'u32[]', space=smem, size = 0x4, offset = 0x4, fixed_abs, tag = 'smem constant byte address 0x4 - core index']
  #allocation1 [shape = 'u32[144,128]{1,0:T(1,128)}', space=vmem, size = 0x12000, scoped, tag = 'internal scratch']
  %s0 = inlined_call_operand.vmem [shape: f32[16,16], index: 0, kind: input, shape index: {}]
  %s1 = inlined_call_operand.vmem [shape: bf16[16,32], index: 1, kind: input, shape index: {}]
  %s2 = inlined_call_operand.vmem [shape: f32[1,32], index: 2, kind: input, shape index: {}]
  %s3 = inlined_call_operand.vmem [shape: f32[16,1], index: 3, kind: input, shape index: {}]
  %s4 = inlined_call_operand.vmem [shape: f32[16,32], index: 4, kind: input, shape index: {}]
  %s5 = inlined_call_operand.hbm [shape: f32[16,32], index: 5, kind: output, shape index: {0}]
  %s6 = inlined_call_operand.hbm [shape: f32[16,32], index: 6, kind: output, shape index: {1}]
  %7 = xla_tuple %s5, %s6
  %s8 = sld [smem:[#allocation0]]
  $region38: #{forward.9} parent=0
    _
  %s10 = ssub.s32 1, %s8
  %s11 = scalar_select 0, %s10, %s8
  $region1: #{forward.9} parent=0
    #allocation2 [shape = 'u8[8192]{0}', space=vmem, size = 0x2000, scoped, tag = 'output window, operand 0, single buffered']
    #allocation3 [shape = 's32[1]{0}', space=sflag, size = 0x4, scoped, tag = 'scoped memory for forward.9']
    #allocation4 [shape = 'u8[8192]{0}', space=vmem, size = 0x2000, scoped, tag = 'output window, operand 1, single buffered']
    #allocation5 [shape = 's32[1]{0}', space=sflag, size = 0x4, scoped, tag = 'scoped memory for forward.9']
    %12 = vsyncpa [#allocation3], 0
    %13 = vsyncpa [#allocation5], 0
    // Predicated region
    $region2: #{forward.9} parent=1 // pred_check
      _
    $region3: #{forward.9} parent=1 // pred_check_branch
      %15 = sbr.rel (0) target = $region5
    $region4: #{forward.9} parent=1 // pred_region
      _
    $region5: #{forward.9} parent=1 // pred_fallthru
      _
    // Predicated region
    $region6: #{forward.9} parent=1 // pred_check
      _
    $region7: #{forward.9} parent=1 // pred_check_branch
      %17 = sbr.rel (0) target = $region9
    $region8: #{forward.9} parent=1 // pred_region
      _
    $region9: #{forward.9} parent=1 // pred_fallthru
      _
    // Predicated region
    $region10: #{forward.9} parent=1 // pred_check
      _
    $region11: #{forward.9} parent=1 // pred_check_branch
      %19 = sbr.rel (0) target = $region13
    $region12: #{forward.9} parent=1 // pred_region
      _
    $region13: #{forward.9} parent=1 // pred_fallthru
      _
    // Predicated region
    $region14: #{forward.9} parent=1 // pred_check
      _
    $region15: #{forward.9} parent=1 // pred_check_branch
      %21 = sbr.rel (0) target = $region17
    $region16: #{forward.9} parent=1 // pred_region
      _
    $region17: #{forward.9} parent=1 // pred_fallthru
      _
    // Predicated region
    $region18: #{forward.9} parent=1 // pred_check
      _
    $region19: #{forward.9} parent=1 // pred_check_branch
      %23 = sbr.rel (0) target = $region21
    $region20: #{forward.9} parent=1 // pred_region
      _
    $region21: #{forward.9} parent=1 // pred_fallthru
      _
    %v25 = vld [vmem:[%s0] sm:$0xff]
    %v26 = vld [vmem:[%s0 + $0x8] sm:$0xff]
    %v27 = vpack.c.bf16 %v26, %v25
    %v28 = vld [vmem:[%s1] sm:$0xf]
    %v29 = vld [vmem:[%s1 + $0x4] sm:$0xf]
    %v30 = vld [vmem:[%s2] sm:$0x1]
    %v32 = vlaneseq
    %v33 = vshrl.u32 %v32, 7
    %v34 = vsub.s32 0, %v33
    %v35 = vrot.slane %v30, %v34
    %v39 = vunpack.c.l.b16 %v28
    %v40 = vunpack.c.l.b16 %v29
    %v41 = vpack.c.b16 %v40, %v39
    %vm43 = vcmask 130048
    %v45 = vsel %vm43, %v27, 0
    %47 = vmatprep.subr.bf16.mxu0 0
    %48 = vmatpush1.bf16.msra.mxu0 0
    %49 = vmatprep.subr.bf16.mxu0 0
    %50 = vmatpush1.bf16.msra.mxu0 0
    %51 = vmatprep.subr.bf16.mxu0 0
    %52 = vmatpush1.bf16.msra.mxu0 0
    %53 = vmatprep.subr.bf16.mxu0 0
    %54 = vmatpush1.bf16.msra.mxu0 0
    %55 = vmatprep.subr.bf16.mxu0 0
    %56 = vmatpush1.bf16.msra.mxu0 0
    %57 = vmatprep.subr.bf16.mxu0 0
    %58 = vmatpush1.bf16.msra.mxu0 0
    %59 = vmatprep.subr.bf16.mxu0 0
    %60 = vmatpush1.bf16.msra.mxu0 0
    %61 = vmatprep.subr.bf16.mxu0 0
    %62 = vmatpush1.bf16.msra.mxu0 %v41
    %63 = vmatprep.subr.bf16.mxu0 0
    %64 = vmatpush2.bf16.msra.mxu0 0
    %65 = vmatprep.subr.bf16.mxu0 0
    %66 = vmatpush2.bf16.msra.mxu0 0
    %67 = vmatprep.subr.bf16.mxu0 0
    %68 = vmatpush2.bf16.msra.mxu0 0
    %69 = vmatprep.subr.bf16.mxu0 0
    %70 = vmatpush2.bf16.msra.mxu0 0
    %71 = vmatprep.subr.bf16.mxu0 0
    %72 = vmatpush2.bf16.msra.mxu0 0
    %73 = vmatprep.subr.bf16.mxu0 0
    %74 = vmatpush2.bf16.msra.mxu0 0
    %75 = vmatprep.subr.bf16.mxu0 0
    %76 = vmatpush2.bf16.msra.mxu0 0
    %77 = vmatprep.subr.bf16.mxu0 0
    %78 = vmatpush2.bf16.msra.mxu0 0
    %79 = vmatprep.mubr.bf16.mxu0 0
    %80 = vmatmul.mubr.bf16.gmra.mxu0 %v45
    %v81 = vpop.f32.mrf.mxu0
    %v82 = vadd.f32 %v35, %v81
    %v83 = vpop.f32.mrf.mxu0
    %v84 = vpop.f32.mrf.mxu0
    %v85 = vadd.f32 %v35, %v84
    %v86 = vpop.f32.mrf.mxu0
    %87 = vdwg.mxu0
    %v88 = vld [vmem:[%s3] sm:$0xff]
    %v89 = vld [vmem:[%s3 + $0x8] sm:$0xff]
    %91 = vset.pattern.permute.xlu0 0
    %92 = vperm.xlu0 %91, %v88
    %v93 = vpop.permute.xlu0 %92
    %96 = vset.pattern.permute.xlu0 0
    %97 = vperm.xlu0 %96, %v89
    %v98 = vpop.permute.xlu0 %97
    %v100 = vmul.f32 %v82, %v93
    %v101 = vmul.f32 %v85, %v98
    %vm102 = vcmask 261120
    %103 = vst.msk [vmem:[#allocation2] sm:$0xff] %vm102, %v100
    %104 = vst.msk [vmem:[#allocation2 + $0x8] sm:$0xff] %vm102, %v101
    %v105 = vld [vmem:[%s4] sm:$0xff]
    %v106 = vld [vmem:[%s4 + $0x8] sm:$0xff]
    %v107 = vadd.f32 %v100, %v105
    %v108 = vadd.f32 %v101, %v106
    %v109 = vmul.f32 %v107, 0.70710677
    %v110 = vmul.f32 %v108, 0.70710677
    %111 = vst.msk [vmem:[#allocation4] sm:$0xff] %vm102, %v109
    %112 = vst.msk [vmem:[#allocation4 + $0x8] sm:$0xff] %vm102, %v110
    // Predicated region
    $region22: #{forward.9} parent=1 // pred_check
      _
    $region23: #{forward.9} parent=1 // pred_check_branch
      %114 = sbr.rel (0) target = $region25
    $region24: #{forward.9} parent=1 // pred_region
      %s116 = ssub.s32 256, 256
      %117 = vsyncadd [#allocation3], %s116
      %s118 = sshll.u32 [#allocation2], 4
      %s119 = int_to_ptr.vmem [resolvable:$true] %s118
      %124 = dma.vmem_to_hbm [thread:$0]  %s119, 256, %s5, [#allocation3], 128, 128, 8
    $region25: #{forward.9} parent=1 // pred_fallthru
      _
    // Predicated region
    $region26: #{forward.9} parent=1 // pred_check
      _
    $region27: #{forward.9} parent=1 // pred_check_branch
      %126 = sbr.rel (0) target = $region29
    $region28: #{forward.9} parent=1 // pred_region
      %s128 = ssub.s32 256, 256
      %129 = vsyncadd [#allocation5], %s128
      %s130 = sshll.u32 [#allocation4], 4
      %s131 = int_to_ptr.vmem [resolvable:$true] %s130
      %136 = dma.vmem_to_hbm [thread:$0]  %s131, 256, %s6, [#allocation5], 128, 128, 8
    $region29: #{forward.9} parent=1 // pred_fallthru
      _
    // Predicated region
    $region30: #{forward.9} parent=1 // pred_check
      _
    $region31: #{forward.9} parent=1 // pred_check_branch
      %138 = sbr.rel (0) target = $region33
    $region32: #{forward.9} parent=1 // pred_region
      %139 = dma.done [#allocation3], 256
    $region33: #{forward.9} parent=1 // pred_fallthru
      _
    // Predicated region
    $region34: #{forward.9} parent=1 // pred_check
      _
    $region35: #{forward.9} parent=1 // pred_check_branch
      %141 = sbr.rel (0) target = $region37
    $region36: #{forward.9} parent=1 // pred_region
      %142 = dma.done [#allocation5], 256
    $region37: #{forward.9} parent=1 // pred_fallthru
      _
    %143 = vsyncpa [#allocation3], 1
    %144 = vsyncpa [#allocation5], 1

// kernel: forward.6
$region0: #{forward.6}
  #allocation0 [shape = 'u32[]', space=smem, size = 0x4, offset = 0x4, fixed_abs, tag = 'smem constant byte address 0x4 - core index']
  #allocation1 [shape = 'u32[144,128]{1,0:T(1,128)}', space=vmem, size = 0x12000, scoped, tag = 'internal scratch']
  %s0 = inlined_call_operand.vmem [shape: f32[16,16], index: 0, kind: input, shape index: {}, may-alias: {0,2}]
  %s1 = inlined_call_operand.vmem [shape: f32[16,1], index: 1, kind: input, shape index: {}]
  %s2 = inlined_call_operand.vmem [shape: f32[16,16], index: 2, kind: input, shape index: {}, may-alias: {0,2}]
  %s3 = inlined_call_operand.vmem [shape: bf16[3,16,32], index: 3, kind: input, shape index: {}]
  %s4 = inlined_call_operand.vmem [shape: f32[1,32], index: 4, kind: input, shape index: {}]
  %s5 = inlined_call_operand.vmem [shape: f32[1,16], index: 5, kind: input, shape index: {}]
  %s6 = inlined_call_operand.vmem [shape: f32[1,16], index: 6, kind: input, shape index: {}]
  %s7 = inlined_call_operand.vmem [shape: f32[16,16], index: 7, kind: output, shape index: {}]
  %s8 = sld [smem:[#allocation0]]
  $region38: #{forward.6} parent=0
    _
  %s10 = ssub.s32 1, %s8
  %s11 = scalar_select 0, %s10, %s8
  // Predicated region
  $region2: #{forward.6} parent=0 // pred_check
    _
  $region3: #{forward.6} parent=0 // pred_check_branch
    %13 = sbr.rel (0) target = $region5
  $region4: #{forward.6} parent=0 // pred_region
    _
  $region5: #{forward.6} parent=0 // pred_fallthru
    _
  // Predicated region
  $region6: #{forward.6} parent=0 // pred_check
    _
  $region7: #{forward.6} parent=0 // pred_check_branch
    %15 = sbr.rel (0) target = $region9
  $region8: #{forward.6} parent=0 // pred_region
    _
  $region9: #{forward.6} parent=0 // pred_fallthru
    _
  // Predicated region
  $region10: #{forward.6} parent=0 // pred_check
    _
  $region11: #{forward.6} parent=0 // pred_check_branch
    %17 = sbr.rel (0) target = $region13
  $region12: #{forward.6} parent=0 // pred_region
    _
  $region13: #{forward.6} parent=0 // pred_fallthru
    _
  // Predicated region
  $region14: #{forward.6} parent=0 // pred_check
    _
  $region15: #{forward.6} parent=0 // pred_check_branch
    %19 = sbr.rel (0) target = $region17
  $region16: #{forward.6} parent=0 // pred_region
    _
  $region17: #{forward.6} parent=0 // pred_fallthru
    _
  // Predicated region
  $region18: #{forward.6} parent=0 // pred_check
    _
  $region19: #{forward.6} parent=0 // pred_check_branch
    %21 = sbr.rel (0) target = $region21
  $region20: #{forward.6} parent=0 // pred_region
    _
  $region21: #{forward.6} parent=0 // pred_fallthru
    _
  // Predicated region
  $region22: #{forward.6} parent=0 // pred_check
    _
  $region23: #{forward.6} parent=0 // pred_check_branch
    %23 = sbr.rel (0) target = $region25
  $region24: #{forward.6} parent=0 // pred_region
    _
  $region25: #{forward.6} parent=0 // pred_fallthru
    _
  // Predicated region
  $region26: #{forward.6} parent=0 // pred_check
    _
  $region27: #{forward.6} parent=0 // pred_check_branch
    %25 = sbr.rel (0) target = $region29
  $region28: #{forward.6} parent=0 // pred_region
    _
  $region29: #{forward.6} parent=0 // pred_fallthru
    _
  %v27 = vld [vmem:[%s0] sm:$0xff]
  %v28 = vld [vmem:[%s0 + $0x8] sm:$0xff]
  %v29 = vld [vmem:[%s1] sm:$0xff]
  %v30 = vld [vmem:[%s1 + $0x8] sm:$0xff]
  %32 = vset.pattern.permute.xlu0 0
  %33 = vperm.xlu0 %32, %v29
  %v34 = vpop.permute.xlu0 %33
  %37 = vset.pattern.permute.xlu0 0
  %38 = vperm.xlu0 %37, %v30
  %v39 = vpop.permute.xlu0 %38
  %v41 = vmul.f32 %v27, %v34
  %v42 = vmul.f32 %v28, %v39
  %v43 = vlaneseq
  %v44 = vshrl.u32 %v43, 7
  %v45 = vadd.s32 %v44, 8
  %vm46 = vcmp.lt.s32.totalorder %v44, 0
  %v47 = vsub.s32 0, %v44
  %v48 = vsel %vm46, %v47, %v44
  %v49 = vshrl.u32 %v48, 3
  %v50 = vand.u32 %v48, 7
  %v51 = vsub.s32 0, %v50
  %v52 = vsel %vm46, %v51, %v50
  %vm53 = vcmp.lt.s32.totalorder %v45, 0
  %v54 = vsub.s32 0, %v45
  %v55 = vsel %vm53, %v54, %v45
  %v56 = vshrl.u32 %v55, 3
  %v57 = vand.u32 %v55, 7
  %v58 = vsub.s32 0, %v57
  %v59 = vsel %vm53, %v58, %v57
  %vm60 = vcmp.ne.s32.totalorder %v52, 0
  %vm61 = vcmp.ne.s32.totalorder %v59, 0
  %vm62 = vcmp.lt.s32.totalorder %v52, 0
  %vm63 = vcmp.lt.s32.totalorder %v59, 0
  %vm64 = vmand %vm62, %vm60
  %vm65 = vmand %vm63, %vm61
  %v66 = vadd.s32 %v52, 8
  %v67 = vadd.s32 %v59, 8
  %v68 = vsel %vm64, %v66, %v52
  %v69 = vsel %vm65, %v67, %v59
  %v70 = vrot.slane %v41, 7
  %v71 = vrot.slane %v42, 7
  %vm72 = vcmp.lt.s32.totalorder %v44, 1
  %v73 = vsel %vm72, %v70, %v71
  %v74 = vsel %vm72, %v71, %v70
  %v75 = vadd.s32 %v68, 4294967295
  %v76 = vadd.s32 %v69, 4294967295
  %vm77 = vcmp.ge.s32.totalorder %v75, 0
  %vm78 = vcmp.ge.s32.totalorder %v76, 0
  %vm79 = vcmp.lt.s32.totalorder %v75, 8
  %vm80 = vcmp.lt.s32.totalorder %v76, 8
  %vm81 = vmand %vm77, %vm79
  %vm82 = vmand %vm78, %vm80
  %v83 = vsel %vm81, %v74, 0.0
  %v84 = vsel %vm82, %v73, 0.0
  %v85 = vpack.c.bf16 %v84, %v83
  %v86 = vld [vmem:[%s3] sm:$0xf]
  %v87 = vld [vmem:[%s3 + $0x4] sm:$0xf]
  %v88 = vpack.c.bf16 %v42, %v41
  %s89 = scalar_lea.vmem %s3, 8
  %v90 = vld [vmem:[%s89] sm:$0xf]
  %v91 = vld [vmem:[%s89 + $0x4] sm:$0xf]
  %v94 = vunpack.c.l.b16 %v90
  %v95 = vunpack.c.l.b16 %v91
  %v96 = vpack.c.b16 %v95, %v94
  %vm98 = vcmask 130048
  %v100 = vsel %vm98, %v88, 0
  %102 = vmatprep.subr.bf16.mxu0 0
  %103 = vmatpush1.bf16.msra.mxu0 0
  %104 = vmatprep.subr.bf16.mxu0 0
  %105 = vmatpush1.bf16.msra.mxu0 0
  %106 = vmatprep.subr.bf16.mxu0 0
  %107 = vmatpush1.bf16.msra.mxu0 0
  %108 = vmatprep.subr.bf16.mxu0 0
  %109 = vmatpush1.bf16.msra.mxu0 0
  %110 = vmatprep.subr.bf16.mxu0 0
  %111 = vmatpush1.bf16.msra.mxu0 0
  %112 = vmatprep.subr.bf16.mxu0 0
  %113 = vmatpush1.bf16.msra.mxu0 0
  %114 = vmatprep.subr.bf16.mxu0 0
  %115 = vmatpush1.bf16.msra.mxu0 0
  %116 = vmatprep.subr.bf16.mxu0 0
  %117 = vmatpush1.bf16.msra.mxu0 %v96
  %118 = vmatprep.subr.bf16.mxu0 0
  %119 = vmatpush2.bf16.msra.mxu0 0
  %120 = vmatprep.subr.bf16.mxu0 0
  %121 = vmatpush2.bf16.msra.mxu0 0
  %122 = vmatprep.subr.bf16.mxu0 0
  %123 = vmatpush2.bf16.msra.mxu0 0
  %124 = vmatprep.subr.bf16.mxu0 0
  %125 = vmatpush2.bf16.msra.mxu0 0
  %126 = vmatprep.subr.bf16.mxu0 0
  %127 = vmatpush2.bf16.msra.mxu0 0
  %128 = vmatprep.subr.bf16.mxu0 0
  %129 = vmatpush2.bf16.msra.mxu0 0
  %130 = vmatprep.subr.bf16.mxu0 0
  %131 = vmatpush2.bf16.msra.mxu0 0
  %132 = vmatprep.subr.bf16.mxu0 0
  %133 = vmatpush2.bf16.msra.mxu0 0
  %134 = vmatprep.mubr.bf16.mxu0 0
  %135 = vmatmul.mubr.bf16.gmra.mxu0 %v100
  %v136 = vpop.f32.mrf.mxu0
  %v137 = vadd.f32 0.0, %v136
  %v138 = vpop.f32.mrf.mxu0
  %v139 = vpop.f32.mrf.mxu0
  %v140 = vadd.f32 0.0, %v139
  %v141 = vpop.f32.mrf.mxu0
  %142 = vdwg.mxu0
  %v145 = vunpack.c.l.b16 %v86
  %v146 = vunpack.c.l.b16 %v87
  %v147 = vpack.c.b16 %v146, %v145
  %v150 = vsel %vm98, %v85, 0
  %152 = vmatprep.subr.bf16.mxu0 0
  %153 = vmatpush1.bf16.msra.mxu0 0
  %154 = vmatprep.subr.bf16.mxu0 0
  %155 = vmatpush1.bf16.msra.mxu0 0
  %156 = vmatprep.subr.bf16.mxu0 0
  %157 = vmatpush1.bf16.msra.mxu0 0
  %158 = vmatprep.subr.bf16.mxu0 0
  %159 = vmatpush1.bf16.msra.mxu0 0
  %160 = vmatprep.subr.bf16.mxu0 0
  %161 = vmatpush1.bf16.msra.mxu0 0
  %162 = vmatprep.subr.bf16.mxu0 0
  %163 = vmatpush1.bf16.msra.mxu0 0
  %164 = vmatprep.subr.bf16.mxu0 0
  %165 = vmatpush1.bf16.msra.mxu0 0
  %166 = vmatprep.subr.bf16.mxu0 0
  %167 = vmatpush1.bf16.msra.mxu0 %v147
  %168 = vmatprep.subr.bf16.mxu0 0
  %169 = vmatpush2.bf16.msra.mxu0 0
  %170 = vmatprep.subr.bf16.mxu0 0
  %171 = vmatpush2.bf16.msra.mxu0 0
  %172 = vmatprep.subr.bf16.mxu0 0
  %173 = vmatpush2.bf16.msra.mxu0 0
  %174 = vmatprep.subr.bf16.mxu0 0
  %175 = vmatpush2.bf16.msra.mxu0 0
  %176 = vmatprep.subr.bf16.mxu0 0
  %177 = vmatpush2.bf16.msra.mxu0 0
  %178 = vmatprep.subr.bf16.mxu0 0
  %179 = vmatpush2.bf16.msra.mxu0 0
  %180 = vmatprep.subr.bf16.mxu0 0
  %181 = vmatpush2.bf16.msra.mxu0 0
  %182 = vmatprep.subr.bf16.mxu0 0
  %183 = vmatpush2.bf16.msra.mxu0 0
  %184 = vmatprep.mubr.bf16.mxu0 0
  %185 = vmatmul.mubr.bf16.gmra.mxu0 %v150
  %v186 = vpop.f32.mrf.mxu0
  %v187 = vadd.f32 %v137, %v186
  %v188 = vpop.f32.mrf.mxu0
  %v189 = vpop.f32.mrf.mxu0
  %v190 = vadd.f32 %v140, %v189
  %v191 = vpop.f32.mrf.mxu0
  %192 = vdwg.mxu0
  %v193 = vrot.slane %v41, 1
  %v194 = vrot.slane %v42, 1
  %vm195 = vcmp.lt.s32.totalorder %v44, 7
  %v196 = vsel %vm195, %v193, %v194
  %v197 = vsel %vm195, %v194, %v193
  %v198 = vadd.s32 %v68, 1
  %v199 = vadd.s32 %v69, 1
  %vm200 = vcmp.ge.s32.totalorder %v198, 0
  %vm201 = vcmp.ge.s32.totalorder %v199, 0
  %vm202 = vcmp.lt.s32.totalorder %v198, 8
  %vm203 = vcmp.lt.s32.totalorder %v199, 8
  %vm204 = vmand %vm200, %vm202
  %vm205 = vmand %vm201, %vm203
  %v206 = vsel %vm204, %v196, 0.0
  %v207 = vsel %vm205, %v197, 0.0
  %v208 = vpack.c.bf16 %v207, %v206
  %s209 = scalar_lea.vmem %s3, 16
  %v210 = vld [vmem:[%s209] sm:$0xf]
  %v211 = vld [vmem:[%s209 + $0x4] sm:$0xf]
  %v214 = vunpack.c.l.b16 %v210
  %v215 = vunpack.c.l.b16 %v211
  %v216 = vpack.c.b16 %v215, %v214
  %v219 = vsel %vm98, %v208, 0
  %221 = vmatprep.subr.bf16.mxu0 0
  %222 = vmatpush1.bf16.msra.mxu0 0
  %223 = vmatprep.subr.bf16.mxu0 0
  %224 = vmatpush1.bf16.msra.mxu0 0
  %225 = vmatprep.subr.bf16.mxu0 0
  %226 = vmatpush1.bf16.msra.mxu0 0
  %227 = vmatprep.subr.bf16.mxu0 0
  %228 = vmatpush1.bf16.msra.mxu0 0
  %229 = vmatprep.subr.bf16.mxu0 0
  %230 = vmatpush1.bf16.msra.mxu0 0
  %231 = vmatprep.subr.bf16.mxu0 0
  %232 = vmatpush1.bf16.msra.mxu0 0
  %233 = vmatprep.subr.bf16.mxu0 0
  %234 = vmatpush1.bf16.msra.mxu0 0
  %235 = vmatprep.subr.bf16.mxu0 0
  %236 = vmatpush1.bf16.msra.mxu0 %v216
  %237 = vmatprep.subr.bf16.mxu0 0
  %238 = vmatpush2.bf16.msra.mxu0 0
  %239 = vmatprep.subr.bf16.mxu0 0
  %240 = vmatpush2.bf16.msra.mxu0 0
  %241 = vmatprep.subr.bf16.mxu0 0
  %242 = vmatpush2.bf16.msra.mxu0 0
  %243 = vmatprep.subr.bf16.mxu0 0
  %244 = vmatpush2.bf16.msra.mxu0 0
  %245 = vmatprep.subr.bf16.mxu0 0
  %246 = vmatpush2.bf16.msra.mxu0 0
  %247 = vmatprep.subr.bf16.mxu0 0
  %248 = vmatpush2.bf16.msra.mxu0 0
  %249 = vmatprep.subr.bf16.mxu0 0
  %250 = vmatpush2.bf16.msra.mxu0 0
  %251 = vmatprep.subr.bf16.mxu0 0
  %252 = vmatpush2.bf16.msra.mxu0 0
  %253 = vmatprep.mubr.bf16.mxu0 0
  %254 = vmatmul.mubr.bf16.gmra.mxu0 %v219
  %v255 = vpop.f32.mrf.mxu0
  %v256 = vadd.f32 0.0, %v255
  %v257 = vpop.f32.mrf.mxu0
  %v258 = vpop.f32.mrf.mxu0
  %v259 = vadd.f32 0.0, %v258
  %v260 = vpop.f32.mrf.mxu0
  %261 = vdwg.mxu0
  %v262 = vadd.f32 %v187, %v256
  %v263 = vadd.f32 %v190, %v259
  %v264 = vld [vmem:[%s4] sm:$0x1]
  %v266 = vlaneseq
  %v267 = vshrl.u32 %v266, 7
  %v268 = vsub.s32 0, %v267
  %v269 = vrot.slane %v264, %v268
  %v271 = vadd.f32 %v262, %v269
  %v272 = vadd.f32 %v263, %v269
  %v273 = vxor.u32 %v271, 2147483648
  %v274 = vxor.u32 %v272, 2147483648
  %v275 = vmul.f32 %v273, 1.442695
  %v276 = vpow.pop %v275
  %v277 = vmul.f32 %v274, 1.442695
  %v278 = vpow.pop %v277
  %v279 = vadd.f32 %v276, 1.0
  %v280 = vadd.f32 %v278, 1.0
  %v281 = vrcp.pop %v279
  %v282 = vmul.f32 1.0, %v281
  %v283 = vrcp.pop %v280
  %v284 = vmul.f32 1.0, %v283
  %287 = vrot.lane.b32.xlu0 %v282, 112
  %v288 = vpop.permute.xlu0 %287
  %289 = vrot.lane.b32.xlu0 %v284, 112
  %v290 = vpop.permute.xlu0 %289
  %v293 = vmul.f32 %v271, %v288
  %v294 = vmul.f32 %v272, %v290
  %v295 = vld [vmem:[%s2] sm:$0xff]
  %v296 = vld [vmem:[%s2 + $0x8] sm:$0xff]
  %v297 = vadd.f32 %v293, %v295
  %v298 = vadd.f32 %v294, %v296
  %v299 = vmul.f32 %v297, 0.70710677
  %v300 = vmul.f32 %v298, 0.70710677
  %v301 = vld [vmem:[%s5] sm:$0x1]
  %v302 = vld [vmem:[%s6] sm:$0x1]
  %v303 = vsel %vm98, %v299, 0.0
  %304 = vadd.xlane.f32.xlu0 %v303
  %v305 = vpop.xlane.xlu0 %304
  %v306 = vsel %vm98, %v300, 0.0
  %307 = vadd.xlane.f32.xlu0 %v306
  %v308 = vpop.xlane.xlu0 %307
  %v309 = vrcp.pop 16.0
  %v310 = vmul.f32 %v305, %v309
  %v311 = vmul.f32 %v308, %v309
  %v312 = vsub.f32 %v299, %v310
  %v313 = vsub.f32 %v300, %v311
  %v314 = vmul.f32 %v312, %v312
  %v315 = vmul.f32 %v313, %v313
  %v316 = vsel %vm98, %v314, 0.0
  %317 = vadd.xlane.f32.xlu0 %v316
  %v318 = vpop.xlane.xlu0 %317
  %v319 = vsel %vm98, %v315, 0.0
  %320 = vadd.xlane.f32.xlu0 %v319
  %v321 = vpop.xlane.xlu0 %320
  %v322 = vmul.f32 %v318, %v309
  %v323 = vmul.f32 %v321, %v309
  %v324 = vadd.f32 %v322, 1e-05
  %v325 = vadd.f32 %v323, 1e-05
  %v326 = vrsqrt.pop %v324
  %v327 = vrsqrt.pop %v325
  %v328 = vmul.f32 %v312, %v326
  %v329 = vmul.f32 %v313, %v327
  %v331 = vlaneseq
  %v332 = vshrl.u32 %v331, 7
  %v333 = vsub.s32 0, %v332
  %v334 = vrot.slane %v301, %v333
  %v336 = vmul.f32 %v328, %v334
  %v337 = vmul.f32 %v329, %v334
  %v339 = vlaneseq
  %v340 = vshrl.u32 %v339, 7
  %v341 = vsub.s32 0, %v340
  %v342 = vrot.slane %v302, %v341
  %v344 = vadd.f32 %v336, %v342
  %v345 = vadd.f32 %v337, %v342
  %346 = vst.msk [vmem:[%s7] sm:$0xff] %vm98, %v344
  %347 = vst.msk [vmem:[%s7 + $0x8] sm:$0xff] %vm98, %v345
  // Predicated region
  $region30: #{forward.6} parent=0 // pred_check
    _
  $region31: #{forward.6} parent=0 // pred_check_branch
    %349 = sbr.rel (0) target = $region33
  $region32: #{forward.6} parent=0 // pred_region
    _
  $region33: #{forward.6} parent=0 // pred_fallthru
    _
  // Predicated region
  $region34: #{forward.6} parent=0 // pred_check
    _
  $region35: #{forward.6} parent=0 // pred_check_branch
    %351 = sbr.rel (0) target = $region37
  $region36: #{forward.6} parent=0 // pred_region
    _
  $region37: #{forward.6} parent=0 // pred_fallthru
    _

// kernel: forward.8
$region0: #{forward.8}
  #allocation0 [shape = 'u32[]', space=smem, size = 0x4, offset = 0x4, fixed_abs, tag = 'smem constant byte address 0x4 - core index']
  #allocation1 [shape = 'u32[144,128]{1,0:T(1,128)}', space=vmem, size = 0x12000, scoped, tag = 'internal scratch']
  %s0 = inlined_call_operand.vmem [shape: f32[2,8,16], index: 0, kind: input, shape index: {}, may-alias: {0,3}]
  %s1 = inlined_call_operand.vmem [shape: f32[2,8,1], index: 1, kind: input, shape index: {}]
  %s2 = inlined_call_operand.vmem [shape: f32[2,1,8], index: 2, kind: input, shape index: {}]
  %s3 = inlined_call_operand.vmem [shape: f32[2,8,16], index: 3, kind: input, shape index: {}, may-alias: {0,3}]
  %s4 = inlined_call_operand.vmem [shape: bf16[3,16,32], index: 4, kind: input, shape index: {}]
  %s5 = inlined_call_operand.vmem [shape: f32[1,32], index: 5, kind: input, shape index: {}]
  %s6 = inlined_call_operand.vmem [shape: bf16[16,16], index: 6, kind: input, shape index: {}]
  %s7 = inlined_call_operand.vmem [shape: f32[1,16], index: 7, kind: input, shape index: {}]
  %s8 = inlined_call_operand.vmem [shape: bf16[16,16], index: 8, kind: input, shape index: {}]
  %s9 = inlined_call_operand.vmem [shape: f32[1,16], index: 9, kind: input, shape index: {}]
  %s10 = inlined_call_operand.vmem [shape: f32[1,16], index: 10, kind: input, shape index: {}]
  %s11 = inlined_call_operand.vmem [shape: f32[1,16], index: 11, kind: input, shape index: {}]
  %s12 = inlined_call_operand.vmem [shape: f32[2,8,16], index: 12, kind: output, shape index: {}]
  %s13 = sld [smem:[#allocation0]]
  $region81: #{forward.8} parent=0
    _
  %s15 = ssub.s32 1, %s13
  %s16 = scalar_select 0, %s15, %s13
  loop: start=0, step=1, limit=4
  $region2: #{forward.8} parent=0 // loop_pre_header
    _
  $region3: #{forward.8} parent=0 // loop_header
    %s18 = sphi 0, %s22
    %p19 = scmp.ge.s32.totalorder %s18, 4
    %s28 = sphi 0, %s30
    %s31 = sphi 0, %s28
    %s32 = sphi 0, %s31
    %s48 = sphi 0, %s32
    %s54 = sphi 0, %s56
    %s57 = sphi 0, %s54
    %s58 = sphi 0, %s57
    %s74 = sphi 0, %s58
    %s80 = sphi 0, %s82
    %s83 = sphi 0, %s80
    %s84 = sphi 0, %s83
    %s100 = sphi 0, %s84
    %s106 = sphi 0, %s108
    %s109 = sphi 0, %s106
    %s110 = sphi 0, %s109
    %s126 = sphi 0, %s110
    %s130 = sphi 0, %s130
    %s132 = sphi 0, %s130
    %s133 = sphi 0, %s132
    %s147 = sphi 0, %s133
    %s151 = sphi 0, %s151
    %s153 = sphi 0, %s151
    %s154 = sphi 0, %s153
    %s168 = sphi 0, %s154
    %s172 = sphi 0, %s172
    %s174 = sphi 0, %s172
    %s175 = sphi 0, %s174
    %s189 = sphi 0, %s175
    %s193 = sphi 0, %s193
    %s195 = sphi 0, %s193
    %s196 = sphi 0, %s195
    %s210 = sphi 0, %s196
    %s214 = sphi 0, %s214
    %s216 = sphi 0, %s214
    %s217 = sphi 0, %s216
    %s231 = sphi 0, %s217
    %s235 = sphi 0, %s235
    %s237 = sphi 0, %s235
    %s238 = sphi 0, %s237
    %s252 = sphi 0, %s238
    %s256 = sphi 0, %s256
    %s258 = sphi 0, %s256
    %s259 = sphi 0, %s258
    %s273 = sphi 0, %s259
    %s277 = sphi 0, %s277
    %s279 = sphi 0, %s277
    %s280 = sphi 0, %s279
    %s294 = sphi 0, %s280
    %s300 = sphi 0, %s302
    %s303 = sphi 0, %s300
    %s304 = sphi 0, %s303
    %s320 = sphi 0, %s304
  $region4: #{forward.8} parent=0 // loop_header_branch
    %21 = sbr.rel (%p19) target = $region8
  $region5: #{forward.8} parent=0 // loop_body
    %s23 = ssub.s32 %s18, 1
    %s24 = ssub.s32 %s18, 2
    %s25 = sadd.s32 %s18, 1
    %s26 = ssub.s32 %s18, %s25
    %p27 = scmp.eq.s32.totalorder %s26, 0
    %s29 = sadd.s32 %s28, 1
    %s30 = scalar_select %p27, %s28, %s29
    %p33 = pneg %p27
    %p34 = scmp.eq.s32.totalorder %s18, 1
    %p35 = por %p33, %p34
    %p36 = scmp.ne.s32.totalorder %s28, %s31
    %p37 = scmp.eq.s32.totalorder %s18, 0
    %p38 = por %p36, %p37
    %p39 = scmp.ne.s32.totalorder %s28, %s31
    %p40 = scmp.eq.s32.totalorder %s23, 1
    %p41 = por %p39, %p40
    %p42 = scmp.ne.s32.totalorder %s31, %s32
    %p43 = scmp.eq.s32.totalorder %s23, 0
    %p44 = por %p42, %p43
    %p45 = scmp.ne.s32.totalorder %s31, %s32
    %p46 = scmp.eq.s32.totalorder %s24, 1
    %p47 = por %p45, %p46
    %p49 = scmp.ne.s32.totalorder %s32, %s48
    %p50 = scmp.eq.s32.totalorder %s24, 0
    %p51 = por %p49, %p50
    %s52 = ssub.s32 %s18, %s25
    %p53 = scmp.eq.s32.totalorder %s52, 0
    %s55 = sadd.s32 %s54, 1
    %s56 = scalar_select %p53, %s54, %s55
    %p59 = pneg %p53
    %p60 = scmp.eq.s32.totalorder %s18, 1
    %p61 = por %p59, %p60
    %p62 = scmp.ne.s32.totalorder %s54, %s57
    %p63 = scmp.eq.s32.totalorder %s18, 0
    %p64 = por %p62, %p63
    %p65 = scmp.ne.s32.totalorder %s54, %s57
    %p66 = scmp.eq.s32.totalorder %s23, 1
    %p67 = por %p65, %p66
    %p68 = scmp.ne.s32.totalorder %s57, %s58
    %p69 = scmp.eq.s32.totalorder %s23, 0
    %p70 = por %p68, %p69
    %p71 = scmp.ne.s32.totalorder %s57, %s58
    %p72 = scmp.eq.s32.totalorder %s24, 1
    %p73 = por %p71, %p72
    %p75 = scmp.ne.s32.totalorder %s58, %s74
    %p76 = scmp.eq.s32.totalorder %s24, 0
    %p77 = por %p75, %p76
    %s78 = ssub.s32 %s18, %s25
    %p79 = scmp.eq.s32.totalorder %s78, 0
    %s81 = sadd.s32 %s80, 1
    %s82 = scalar_select %p79, %s80, %s81
    %p85 = pneg %p79
    %p86 = scmp.eq.s32.totalorder %s18, 1
    %p87 = por %p85, %p86
    %p88 = scmp.ne.s32.totalorder %s80, %s83
    %p89 = scmp.eq.s32.totalorder %s18, 0
    %p90 = por %p88, %p89
    %p91 = scmp.ne.s32.totalorder %s80, %s83
    %p92 = scmp.eq.s32.totalorder %s23, 1
    %p93 = por %p91, %p92
    %p94 = scmp.ne.s32.totalorder %s83, %s84
    %p95 = scmp.eq.s32.totalorder %s23, 0
    %p96 = por %p94, %p95
    %p97 = scmp.ne.s32.totalorder %s83, %s84
    %p98 = scmp.eq.s32.totalorder %s24, 1
    %p99 = por %p97, %p98
    %p101 = scmp.ne.s32.totalorder %s84, %s100
    %p102 = scmp.eq.s32.totalorder %s24, 0
    %p103 = por %p101, %p102
    %s104 = ssub.s32 %s18, %s25
    %p105 = scmp.eq.s32.totalorder %s104, 0
    %s107 = sadd.s32 %s106, 1
    %s108 = scalar_select %p105, %s106, %s107
    %p111 = pneg %p105
    %p112 = scmp.eq.s32.totalorder %s18, 1
    %p113 = por %p111, %p112
    %p114 = scmp.ne.s32.totalorder %s106, %s109
    %p115 = scmp.eq.s32.totalorder %s18, 0
    %p116 = por %p114, %p115
    %p117 = scmp.ne.s32.totalorder %s106, %s109
    %p118 = scmp.eq.s32.totalorder %s23, 1
    %p119 = por %p117, %p118
    %p120 = scmp.ne.s32.totalorder %s109, %s110
    %p121 = scmp.eq.s32.totalorder %s23, 0
    %p122 = por %p120, %p121
    %p123 = scmp.ne.s32.totalorder %s109, %s110
    %p124 = scmp.eq.s32.totalorder %s24, 1
    %p125 = por %p123, %p124
    %p127 = scmp.ne.s32.totalorder %s110, %s126
    %p128 = scmp.eq.s32.totalorder %s24, 0
    %p129 = por %p127, %p128
    %s131 = sadd.s32 %s130, 1
    %p134 = scmp.eq.s32.totalorder %s18, 1
    %p135 = scmp.ne.s32.totalorder %s130, %s132
    %p136 = scmp.eq.s32.totalorder %s18, 0
    %p137 = por %p135, %p136
    %p138 = scmp.ne.s32.totalorder %s130, %s132
    %p139 = scmp.eq.s32.totalorder %s23, 1
    %p140 = por %p138, %p139
    %p141 = scmp.ne.s32.totalorder %s132, %s133
    %p142 = scmp.eq.s32.totalorder %s23, 0
    %p143 = por %p141, %p142
    %p144 = scmp.ne.s32.totalorder %s132, %s133
    %p145 = scmp.eq.s32.totalorder %s24, 1
    %p146 = por %p144, %p145
    %p148 = scmp.ne.s32.totalorder %s133, %s147
    %p149 = scmp.eq.s32.totalorder %s24, 0
    %p150 = por %p148, %p149
    %s152 = sadd.s32 %s151, 1
    %p155 = scmp.eq.s32.totalorder %s18, 1
    %p156 = scmp.ne.s32.totalorder %s151, %s153
    %p157 = scmp.eq.s32.totalorder %s18, 0
    %p158 = por %p156, %p157
    %p159 = scmp.ne.s32.totalorder %s151, %s153
    %p160 = scmp.eq.s32.totalorder %s23, 1
    %p161 = por %p159, %p160
    %p162 = scmp.ne.s32.totalorder %s153, %s154
    %p163 = scmp.eq.s32.totalorder %s23, 0
    %p164 = por %p162, %p163
    %p165 = scmp.ne.s32.totalorder %s153, %s154
    %p166 = scmp.eq.s32.totalorder %s24, 1
    %p167 = por %p165, %p166
    %p169 = scmp.ne.s32.totalorder %s154, %s168
    %p170 = scmp.eq.s32.totalorder %s24, 0
    %p171 = por %p169, %p170
    %s173 = sadd.s32 %s172, 1
    %p176 = scmp.eq.s32.totalorder %s18, 1
    %p177 = scmp.ne.s32.totalorder %s172, %s174
    %p178 = scmp.eq.s32.totalorder %s18, 0
    %p179 = por %p177, %p178
    %p180 = scmp.ne.s32.totalorder %s172, %s174
    %p181 = scmp.eq.s32.totalorder %s23, 1
    %p182 = por %p180, %p181
    %p183 = scmp.ne.s32.totalorder %s174, %s175
    %p184 = scmp.eq.s32.totalorder %s23, 0
    %p185 = por %p183, %p184
    %p186 = scmp.ne.s32.totalorder %s174, %s175
    %p187 = scmp.eq.s32.totalorder %s24, 1
    %p188 = por %p186, %p187
    %p190 = scmp.ne.s32.totalorder %s175, %s189
    %p191 = scmp.eq.s32.totalorder %s24, 0
    %p192 = por %p190, %p191
    %s194 = sadd.s32 %s193, 1
    %p197 = scmp.eq.s32.totalorder %s18, 1
    %p198 = scmp.ne.s32.totalorder %s193, %s195
    %p199 = scmp.eq.s32.totalorder %s18, 0
    %p200 = por %p198, %p199
    %p201 = scmp.ne.s32.totalorder %s193, %s195
    %p202 = scmp.eq.s32.totalorder %s23, 1
    %p203 = por %p201, %p202
    %p204 = scmp.ne.s32.totalorder %s195, %s196
    %p205 = scmp.eq.s32.totalorder %s23, 0
    %p206 = por %p204, %p205
    %p207 = scmp.ne.s32.totalorder %s195, %s196
    %p208 = scmp.eq.s32.totalorder %s24, 1
    %p209 = por %p207, %p208
    %p211 = scmp.ne.s32.totalorder %s196, %s210
    %p212 = scmp.eq.s32.totalorder %s24, 0
    %p213 = por %p211, %p212
    %s215 = sadd.s32 %s214, 1
    %p218 = scmp.eq.s32.totalorder %s18, 1
    %p219 = scmp.ne.s32.totalorder %s214, %s216
    %p220 = scmp.eq.s32.totalorder %s18, 0
    %p221 = por %p219, %p220
    %p222 = scmp.ne.s32.totalorder %s214, %s216
    %p223 = scmp.eq.s32.totalorder %s23, 1
    %p224 = por %p222, %p223
    %p225 = scmp.ne.s32.totalorder %s216, %s217
    %p226 = scmp.eq.s32.totalorder %s23, 0
    %p227 = por %p225, %p226
    %p228 = scmp.ne.s32.totalorder %s216, %s217
    %p229 = scmp.eq.s32.totalorder %s24, 1
    %p230 = por %p228, %p229
    %p232 = scmp.ne.s32.totalorder %s217, %s231
    %p233 = scmp.eq.s32.totalorder %s24, 0
    %p234 = por %p232, %p233
    %s236 = sadd.s32 %s235, 1
    %p239 = scmp.eq.s32.totalorder %s18, 1
    %p240 = scmp.ne.s32.totalorder %s235, %s237
    %p241 = scmp.eq.s32.totalorder %s18, 0
    %p242 = por %p240, %p241
    %p243 = scmp.ne.s32.totalorder %s235, %s237
    %p244 = scmp.eq.s32.totalorder %s23, 1
    %p245 = por %p243, %p244
    %p246 = scmp.ne.s32.totalorder %s237, %s238
    %p247 = scmp.eq.s32.totalorder %s23, 0
    %p248 = por %p246, %p247
    %p249 = scmp.ne.s32.totalorder %s237, %s238
    %p250 = scmp.eq.s32.totalorder %s24, 1
    %p251 = por %p249, %p250
    %p253 = scmp.ne.s32.totalorder %s238, %s252
    %p254 = scmp.eq.s32.totalorder %s24, 0
    %p255 = por %p253, %p254
    %s257 = sadd.s32 %s256, 1
    %p260 = scmp.eq.s32.totalorder %s18, 1
    %p261 = scmp.ne.s32.totalorder %s256, %s258
    %p262 = scmp.eq.s32.totalorder %s18, 0
    %p263 = por %p261, %p262
    %p264 = scmp.ne.s32.totalorder %s256, %s258
    %p265 = scmp.eq.s32.totalorder %s23, 1
    %p266 = por %p264, %p265
    %p267 = scmp.ne.s32.totalorder %s258, %s259
    %p268 = scmp.eq.s32.totalorder %s23, 0
    %p269 = por %p267, %p268
    %p270 = scmp.ne.s32.totalorder %s258, %s259
    %p271 = scmp.eq.s32.totalorder %s24, 1
    %p272 = por %p270, %p271
    %p274 = scmp.ne.s32.totalorder %s259, %s273
    %p275 = scmp.eq.s32.totalorder %s24, 0
    %p276 = por %p274, %p275
    %s278 = sadd.s32 %s277, 1
    %p281 = scmp.eq.s32.totalorder %s18, 1
    %p282 = scmp.ne.s32.totalorder %s277, %s279
    %p283 = scmp.eq.s32.totalorder %s18, 0
    %p284 = por %p282, %p283
    %p285 = scmp.ne.s32.totalorder %s277, %s279
    %p286 = scmp.eq.s32.totalorder %s23, 1
    %p287 = por %p285, %p286
    %p288 = scmp.ne.s32.totalorder %s279, %s280
    %p289 = scmp.eq.s32.totalorder %s23, 0
    %p290 = por %p288, %p289
    %p291 = scmp.ne.s32.totalorder %s279, %s280
    %p292 = scmp.eq.s32.totalorder %s24, 1
    %p293 = por %p291, %p292
    %p295 = scmp.ne.s32.totalorder %s280, %s294
    %p296 = scmp.eq.s32.totalorder %s24, 0
    %p297 = por %p295, %p296
    %s298 = ssub.s32 %s18, %s25
    %p299 = scmp.eq.s32.totalorder %s298, 0
    %s301 = sadd.s32 %s300, 1
    %s302 = scalar_select %p299, %s300, %s301
    %p305 = pneg %p299
    %p306 = scmp.eq.s32.totalorder %s18, 1
    %p307 = por %p305, %p306
    %p308 = scmp.ne.s32.totalorder %s300, %s303
    %p309 = scmp.eq.s32.totalorder %s18, 0
    %p310 = por %p308, %p309
    %p311 = scmp.ne.s32.totalorder %s300, %s303
    %p312 = scmp.eq.s32.totalorder %s23, 1
    %p313 = por %p311, %p312
    %p314 = scmp.ne.s32.totalorder %s303, %s304
    %p315 = scmp.eq.s32.totalorder %s23, 0
    %p316 = por %p314, %p315
    %p317 = scmp.ne.s32.totalorder %s303, %s304
    %p318 = scmp.eq.s32.totalorder %s24, 1
    %p319 = por %p317, %p318
    %p321 = scmp.ne.s32.totalorder %s304, %s320
    %p322 = scmp.eq.s32.totalorder %s24, 0
    %p323 = por %p321, %p322
    %p324 = scmp.le.s32.totalorder 1, %s18
    %p325 = scmp.lt.s32.totalorder %s18, 3
    %p326 = pnand %p324, %p325
    %p327 = pneg %p326
    // Predicated region
    $region9: #{forward.8} parent=5 // pred_check
      _
    $region10: #{forward.8} parent=5 // pred_check_branch
      %329 = sbr.rel (%p326) target = $region12
    $region11: #{forward.8} parent=5 // pred_region
      %s330 = ssub.s32 %s18, 1
      // Predicated region
      $region13: #{forward.8} parent=11 // pred_check
        %p331 = pneg %p143
      $region14: #{forward.8} parent=11 // pred_check_branch
        %333 = sbr.rel (%p331) target = $region16
      $region15: #{forward.8} parent=11 // pred_region
        _
      $region16: #{forward.8} parent=11 // pred_fallthru
        _
      // Predicated region
      $region17: #{forward.8} parent=11 // pred_check
        %p334 = pneg %p164
      $region18: #{forward.8} parent=11 // pred_check_branch
        %336 = sbr.rel (%p334) target = $region20
      $region19: #{forward.8} parent=11 // pred_region
        _
      $region20: #{forward.8} parent=11 // pred_fallthru
        _
      // Predicated region
      $region21: #{forward.8} parent=11 // pred_check
        %p337 = pneg %p185
      $region22: #{forward.8} parent=11 // pred_check_branch
        %339 = sbr.rel (%p337) target = $region24
      $region23: #{forward.8} parent=11 // pred_region
        _
      $region24: #{forward.8} parent=11 // pred_fallthru
        _
      // Predicated region
      $region25: #{forward.8} parent=11 // pred_check
        %p340 = pneg %p206
      $region26: #{forward.8} parent=11 // pred_check_branch
        %342 = sbr.rel (%p340) target = $region28
      $region27: #{forward.8} parent=11 // pred_region
        _
      $region28: #{forward.8} parent=11 // pred_fallthru
        _
      // Predicated region
      $region29: #{forward.8} parent=11 // pred_check
        %p343 = pneg %p227
      $region30: #{forward.8} parent=11 // pred_check_branch
        %345 = sbr.rel (%p343) target = $region32
      $region31: #{forward.8} parent=11 // pred_region
        _
      $region32: #{forward.8} parent=11 // pred_fallthru
        _
      // Predicated region
      $region33: #{forward.8} parent=11 // pred_check
        %p346 = pneg %p248
      $region34: #{forward.8} parent=11 // pred_check_branch
        %348 = sbr.rel (%p346) target = $region36
      $region35: #{forward.8} parent=11 // pred_region
        _
      $region36: #{forward.8} parent=11 // pred_fallthru
        _
      // Predicated region
      $region37: #{forward.8} parent=11 // pred_check
        %p349 = pneg %p269
      $region38: #{forward.8} parent=11 // pred_check_branch
        %351 = sbr.rel (%p349) target = $region40
      $region39: #{forward.8} parent=11 // pred_region
        _
      $region40: #{forward.8} parent=11 // pred_fallthru
        _
      // Predicated region
      $region41: #{forward.8} parent=11 // pred_check
        %p352 = pneg %p290
      $region42: #{forward.8} parent=11 // pred_check_branch
        %354 = sbr.rel (%p352) target = $region44
      $region43: #{forward.8} parent=11 // pred_region
        _
      $region44: #{forward.8} parent=11 // pred_fallthru
        _
    $region12: #{forward.8} parent=5 // pred_fallthru
      _
    %p355 = scmp.lt.s32.totalorder %s18, 2
    // Predicated region
    $region45: #{forward.8} parent=5 // pred_check
      %p356 = pneg %p355
    $region46: #{forward.8} parent=5 // pred_check_branch
      %358 = sbr.rel (%p356) target = $region48
    $region47: #{forward.8} parent=5 // pred_region
      // Predicated region
      $region49: #{forward.8} parent=47 // pred_check
        %p359 = pneg %p38
      $region50: #{forward.8} parent=47 // pred_check_branch
        %361 = sbr.rel (%p359) target = $region52
      $region51: #{forward.8} parent=47 // pred_region
        %p362 = scmp.lt.s32.totalorder %s18, 1
        %s363 = scalar_select %p362, %s18, 1
        %s364 = smul.addr %s363, 8
        %s365 = scalar_lea.vmem %s0, %s364
      $region52: #{forward.8} parent=47 // pred_fallthru
        _
      // Predicated region
      $region53: #{forward.8} parent=47 // pred_check
        %p366 = pneg %p64
      $region54: #{forward.8} parent=47 // pred_check_branch
        %368 = sbr.rel (%p366) target = $region56
      $region55: #{forward.8} parent=47 // pred_region
        %p369 = scmp.lt.s32.totalorder %s18, 1
        %s370 = scalar_select %p369, %s18, 1
        %s371 = smul.addr %s370, 8
        %s372 = scalar_lea.vmem %s1, %s371
      $region56: #{forward.8} parent=47 // pred_fallthru
        _
      // Predicated region
      $region57: #{forward.8} parent=47 // pred_check
        %p373 = pneg %p90
      $region58: #{forward.8} parent=47 // pred_check_branch
        %375 = sbr.rel (%p373) target = $region60
      $region59: #{forward.8} parent=47 // pred_region
        %p376 = scmp.lt.s32.totalorder %s18, 1
        %s377 = scalar_select %p376, %s18, 1
        %s378 = scalar_lea.vmem %s2, %s377
      $region60: #{forward.8} parent=47 // pred_fallthru
        _
      // Predicated region
      $region61: #{forward.8} parent=47 // pred_check
        %p379 = pneg %p116
      $region62: #{forward.8} parent=47 // pred_check_branch
        %381 = sbr.rel (%p379) target = $region64
      $region63: #{forward.8} parent=47 // pred_region
        %p382 = scmp.lt.s32.totalorder %s18, 1
        %s383 = scalar_select %p382, %s18, 1
        %s384 = smul.addr %s383, 8
        %s385 = scalar_lea.vmem %s3, %s384
      $region64: #{forward.8} parent=47 // pred_fallthru
        _
    $region48: #{forward.8} parent=5 // pred_fallthru
      _
    %p386 = scmp.le.s32.totalorder 1, %s18
    %p387 = scmp.lt.s32.totalorder %s18, 3
    %p388 = pnand %p386, %p387
    %p389 = pneg %p388
    // Predicated region
    $region65: #{forward.8} parent=5 // pred_check
      _
    $region66: #{forward.8} parent=5 // pred_check_branch
      %391 = sbr.rel (%p388) target = $region68
    $region67: #{forward.8} parent=5 // pred_region
      %s392 = ssub.s32 %s18, 1
      %p393 = scmp.lt.s32.totalorder %s23, 1
      %s394 = scalar_select %p393, %s23, 1
      %s395 = smul.addr %s394, 8
      %s396 = scalar_lea.vmem %s0, %s395
      %p397 = pneg %p44
      %p398 = pneg %p41
      %p399 = scmp.lt.s32.totalorder %s23, 1
      %s400 = scalar_select %p399, %s23, 1
      %s401 = smul.addr %s400, 8
      %s402 = scalar_lea.vmem %s1, %s401
      %p403 = pneg %p70
      %p404 = pneg %p67
      %p405 = scmp.lt.s32.totalorder %s23, 1
      %s406 = scalar_select %p405, %s23, 1
      %s407 = scalar_lea.vmem %s2, %s406
      %p408 = pneg %p96
      %p409 = pneg %p93
      %p410 = scmp.lt.s32.totalorder %s23, 1
      %s411 = scalar_select %p410, %s23, 1
      %s412 = smul.addr %s411, 8
      %s413 = scalar_lea.vmem %s3, %s412
      %p414 = pneg %p122
      %p415 = pneg %p119
      %p416 = pneg %p143
      %p417 = pneg %p140
      %p418 = pneg %p164
      %p419 = pneg %p161
      %p420 = pneg %p185
      %p421 = pneg %p182
      %p422 = pneg %p206
      %p423 = pneg %p203
      %p424 = pneg %p227
      %p425 = pneg %p224
      %p426 = pneg %p248
      %p427 = pneg %p245
      %p428 = pneg %p269
      %p429 = pneg %p266
      %p430 = pneg %p290
      %p431 = pneg %p287
      %p432 = pneg %p316
      %p433 = pneg %p313
      %p434 = scmp.lt.s32.totalorder %s23, 1
      %s435 = scalar_select %p434, %s23, 1
      %s436 = smul.addr %s435, 8
      %s437 = scalar_lea.vmem %s12, %s436
      %p438 = scmp.lt.s32.totalorder %s23, 1
      %s439 = scalar_select %p438, %s23, 1
      %s440 = smul.addr %s439, 8
      %s441 = scalar_lea.vmem %s0, %s440
      %p442 = scmp.lt.s32.totalorder %s23, 1
      %s443 = scalar_select %p442, %s23, 1
      %s444 = smul.addr %s443, 8
      %s445 = scalar_lea.vmem %s1, %s444
      %p446 = scmp.lt.s32.totalorder %s23, 1
      %s447 = scalar_select %p446, %s23, 1
      %s448 = scalar_lea.vmem %s2, %s447
      %p449 = scmp.lt.s32.totalorder %s23, 1
      %s450 = scalar_select %p449, %s23, 1
      %s451 = smul.addr %s450, 8
      %s452 = scalar_lea.vmem %s3, %s451
      %p453 = scmp.lt.s32.totalorder %s23, 1
      %s454 = scalar_select %p453, %s23, 1
      %s455 = smul.addr %s454, 8
      %s456 = scalar_lea.vmem %s12, %s455
      %v458 = vld [vmem:[%s441] sm:$0xff]
      %v459 = vld [vmem:[%s445] sm:$0xff]
      %461 = vset.pattern.permute.xlu0 0
      %462 = vperm.xlu0 %461, %v459
      %v463 = vpop.permute.xlu0 %462
      %v465 = vmul.f32 %v458, %v463
      %v466 = vlaneseq
      %v467 = vshrl.u32 %v466, 7
      %vm468 = vcmp.lt.s32.totalorder %v467, 0
      %v469 = vsub.s32 0, %v467
      %v470 = vsel %vm468, %v469, %v467
      %v471 = vshrl.u32 %v470, 3
      %v472 = vand.u32 %v470, 7
      %v473 = vsub.s32 0, %v472
      %v474 = vsel %vm468, %v473, %v472
      %vm475 = vcmp.ne.s32.totalorder %v474, 0
      %vm476 = vcmp.lt.s32.totalorder %v474, 0
      %vm477 = vmand %vm476, %vm475
      %v478 = vadd.s32 %v474, 8
      %v479 = vsel %vm477, %v478, %v474
      %v480 = vrot.slane %v465, 7
      %v481 = vadd.s32 %v479, 4294967295
      %vm482 = vcmp.ge.s32.totalorder %v481, 0
      %vm483 = vcmp.lt.s32.totalorder %v481, 8
      %vm484 = vmand %vm482, %vm483
      %v485 = vsel %vm484, %v480, 0.0
      %v486 = vpack.c.bf16 %v485, %v485
      %v487 = vld [vmem:[%s4] sm:$0xf]
      %v488 = vld [vmem:[%s4 + $0x4] sm:$0xf]
      %v489 = vpack.c.bf16 %v465, %v465
      %s490 = scalar_lea.vmem %s4, 8
      %v491 = vld [vmem:[%s490] sm:$0xf]
      %v492 = vld [vmem:[%s490 + $0x4] sm:$0xf]
      %v495 = vunpack.c.l.b16 %v491
      %v496 = vunpack.c.l.b16 %v492
      %v497 = vpack.c.b16 %v496, %v495
      %vm499 = vcmask 130048
      %v501 = vsel %vm499, %v489, 0
      %503 = vmatprep.subr.bf16.mxu0 0
      %504 = vmatpush1.bf16.msra.mxu0 0
      %505 = vmatprep.subr.bf16.mxu0 0
      %506 = vmatpush1.bf16.msra.mxu0 0
      %507 = vmatprep.subr.bf16.mxu0 0
      %508 = vmatpush1.bf16.msra.mxu0 0
      %509 = vmatprep.subr.bf16.mxu0 0
      %510 = vmatpush1.bf16.msra.mxu0 0
      %511 = vmatprep.subr.bf16.mxu0 0
      %512 = vmatpush1.bf16.msra.mxu0 0
      %513 = vmatprep.subr.bf16.mxu0 0
      %514 = vmatpush1.bf16.msra.mxu0 0
      %515 = vmatprep.subr.bf16.mxu0 0
      %516 = vmatpush1.bf16.msra.mxu0 0
      %517 = vmatprep.subr.bf16.mxu0 0
      %518 = vmatpush1.bf16.msra.mxu0 %v497
      %519 = vmatprep.subr.bf16.mxu0 0
      %520 = vmatpush2.bf16.msra.mxu0 0
      %521 = vmatprep.subr.bf16.mxu0 0
      %522 = vmatpush2.bf16.msra.mxu0 0
      %523 = vmatprep.subr.bf16.mxu0 0
      %524 = vmatpush2.bf16.msra.mxu0 0
      %525 = vmatprep.subr.bf16.mxu0 0
      %526 = vmatpush2.bf16.msra.mxu0 0
      %527 = vmatprep.subr.bf16.mxu0 0
      %528 = vmatpush2.bf16.msra.mxu0 0
      %529 = vmatprep.subr.bf16.mxu0 0
      %530 = vmatpush2.bf16.msra.mxu0 0
      %531 = vmatprep.subr.bf16.mxu0 0
      %532 = vmatpush2.bf16.msra.mxu0 0
      %533 = vmatprep.subr.bf16.mxu0 0
      %534 = vmatpush2.bf16.msra.mxu0 0
      %535 = vmatprep.mubr.bf16.mxu0 0
      %536 = vmatmul.mubr.bf16.gmra.mxu0 %v501
      %v537 = vpop.f32.mrf.mxu0
      %v538 = vadd.f32 0.0, %v537
      %v539 = vpop.f32.mrf.mxu0
      %v540 = vpop.f32.mrf.mxu0
      %v541 = vpop.f32.mrf.mxu0
      %542 = vdwg.mxu0
      %v545 = vunpack.c.l.b16 %v487
      %v546 = vunpack.c.l.b16 %v488
      %v547 = vpack.c.b16 %v546, %v545
      %v550 = vsel %vm499, %v486, 0
      %552 = vmatprep.subr.bf16.mxu0 0
      %553 = vmatpush1.bf16.msra.mxu0 0
      %554 = vmatprep.subr.bf16.mxu0 0
      %555 = vmatpush1.bf16.msra.mxu0 0
      %556 = vmatprep.subr.bf16.mxu0 0
      %557 = vmatpush1.bf16.msra.mxu0 0
      %558 = vmatprep.subr.bf16.mxu0 0
      %559 = vmatpush1.bf16.msra.mxu0 0
      %560 = vmatprep.subr.bf16.mxu0 0
      %561 = vmatpush1.bf16.msra.mxu0 0
      %562 = vmatprep.subr.bf16.mxu0 0
      %563 = vmatpush1.bf16.msra.mxu0 0
      %564 = vmatprep.subr.bf16.mxu0 0
      %565 = vmatpush1.bf16.msra.mxu0 0
      %566 = vmatprep.subr.bf16.mxu0 0
      %567 = vmatpush1.bf16.msra.mxu0 %v547
      %568 = vmatprep.subr.bf16.mxu0 0
      %569 = vmatpush2.bf16.msra.mxu0 0
      %570 = vmatprep.subr.bf16.mxu0 0
      %571 = vmatpush2.bf16.msra.mxu0 0
      %572 = vmatprep.subr.bf16.mxu0 0
      %573 = vmatpush2.bf16.msra.mxu0 0
      %574 = vmatprep.subr.bf16.mxu0 0
      %575 = vmatpush2.bf16.msra.mxu0 0
      %576 = vmatprep.subr.bf16.mxu0 0
      %577 = vmatpush2.bf16.msra.mxu0 0
      %578 = vmatprep.subr.bf16.mxu0 0
      %579 = vmatpush2.bf16.msra.mxu0 0
      %580 = vmatprep.subr.bf16.mxu0 0
      %581 = vmatpush2.bf16.msra.mxu0 0
      %582 = vmatprep.subr.bf16.mxu0 0
      %583 = vmatpush2.bf16.msra.mxu0 0
      %584 = vmatprep.mubr.bf16.mxu0 0
      %585 = vmatmul.mubr.bf16.gmra.mxu0 %v550
      %v586 = vpop.f32.mrf.mxu0
      %v587 = vadd.f32 %v538, %v586
      %v588 = vpop.f32.mrf.mxu0
      %v589 = vpop.f32.mrf.mxu0
      %v590 = vpop.f32.mrf.mxu0
      %591 = vdwg.mxu0
      %v592 = vrot.slane %v465, 1
      %v593 = vadd.s32 %v479, 1
      %vm594 = vcmp.ge.s32.totalorder %v593, 0
      %vm595 = vcmp.lt.s32.totalorder %v593, 8
      %vm596 = vmand %vm594, %vm595
      %v597 = vsel %vm596, %v592, 0.0
      %v598 = vpack.c.bf16 %v597, %v597
      %s599 = scalar_lea.vmem %s4, 16
      %v600 = vld [vmem:[%s599] sm:$0xf]
      %v601 = vld [vmem:[%s599 + $0x4] sm:$0xf]
      %v604 = vunpack.c.l.b16 %v600
      %v605 = vunpack.c.l.b16 %v601
      %v606 = vpack.c.b16 %v605, %v604
      %v609 = vsel %vm499, %v598, 0
      %611 = vmatprep.subr.bf16.mxu0 0
      %612 = vmatpush1.bf16.msra.mxu0 0
      %613 = vmatprep.subr.bf16.mxu0 0
      %614 = vmatpush1.bf16.msra.mxu0 0
      %615 = vmatprep.subr.bf16.mxu0 0
      %616 = vmatpush1.bf16.msra.mxu0 0
      %617 = vmatprep.subr.bf16.mxu0 0
      %618 = vmatpush1.bf16.msra.mxu0 0
      %619 = vmatprep.subr.bf16.mxu0 0
      %620 = vmatpush1.bf16.msra.mxu0 0
      %621 = vmatprep.subr.bf16.mxu0 0
      %622 = vmatpush1.bf16.msra.mxu0 0
      %623 = vmatprep.subr.bf16.mxu0 0
      %624 = vmatpush1.bf16.msra.mxu0 0
      %625 = vmatprep.subr.bf16.mxu0 0
      %626 = vmatpush1.bf16.msra.mxu0 %v606
      %627 = vmatprep.subr.bf16.mxu0 0
      %628 = vmatpush2.bf16.msra.mxu0 0
      %629 = vmatprep.subr.bf16.mxu0 0
      %630 = vmatpush2.bf16.msra.mxu0 0
      %631 = vmatprep.subr.bf16.mxu0 0
      %632 = vmatpush2.bf16.msra.mxu0 0
      %633 = vmatprep.subr.bf16.mxu0 0
      %634 = vmatpush2.bf16.msra.mxu0 0
      %635 = vmatprep.subr.bf16.mxu0 0
      %636 = vmatpush2.bf16.msra.mxu0 0
      %637 = vmatprep.subr.bf16.mxu0 0
      %638 = vmatpush2.bf16.msra.mxu0 0
      %639 = vmatprep.subr.bf16.mxu0 0
      %640 = vmatpush2.bf16.msra.mxu0 0
      %641 = vmatprep.subr.bf16.mxu0 0
      %642 = vmatpush2.bf16.msra.mxu0 0
      %643 = vmatprep.mubr.bf16.mxu0 0
      %644 = vmatmul.mubr.bf16.gmra.mxu0 %v609
      %v645 = vpop.f32.mrf.mxu0
      %v646 = vadd.f32 0.0, %v645
      %v647 = vpop.f32.mrf.mxu0
      %v648 = vpop.f32.mrf.mxu0
      %v649 = vpop.f32.mrf.mxu0
      %650 = vdwg.mxu0
      %v651 = vadd.f32 %v587, %v646
      %v652 = vld [vmem:[%s5] sm:$0x1]
      %v654 = vlaneseq
      %v655 = vshrl.u32 %v654, 7
      %v656 = vsub.s32 0, %v655
      %v657 = vrot.slane %v652, %v656
      %v659 = vadd.f32 %v651, %v657
      %v660 = vxor.u32 %v659, 2147483648
      %v661 = vmul.f32 %v660, 1.442695
      %v662 = vpow.pop %v661
      %v663 = vadd.f32 %v662, 1.0
      %v664 = vrcp.pop %v663
      %v665 = vmul.f32 1.0, %v664
      %667 = vrot.lane.b32.xlu0 %v665, 112
      %v668 = vpop.permute.xlu0 %667
      %v670 = vmul.f32 %v659, %v668
      %v671 = vpack.c.bf16 %v670, %v670
      %v672 = vld [vmem:[%s6] sm:$0xf]
      %v673 = vld [vmem:[%s6 + $0x4] sm:$0xf]
      %v674 = vld [vmem:[%s7] sm:$0x1]
      %v676 = vlaneseq
      %v677 = vshrl.u32 %v676, 7
      %v678 = vsub.s32 0, %v677
      %v679 = vrot.slane %v674, %v678
      %v683 = vunpack.c.l.b16 %v672
      %v684 = vunpack.c.l.b16 %v673
      %v685 = vpack.c.b16 %v684, %v683
      %v688 = vsel %vm499, %v671, 0
      %690 = vmatprep.subr.bf16.mxu0 0
      %691 = vmatpush1.bf16.msra.mxu0 0
      %692 = vmatprep.subr.bf16.mxu0 0
      %693 = vmatpush1.bf16.msra.mxu0 0
      %694 = vmatprep.subr.bf16.mxu0 0
      %695 = vmatpush1.bf16.msra.mxu0 0
      %696 = vmatprep.subr.bf16.mxu0 0
      %697 = vmatpush1.bf16.msra.mxu0 0
      %698 = vmatprep.subr.bf16.mxu0 0
      %699 = vmatpush1.bf16.msra.mxu0 0
      %700 = vmatprep.subr.bf16.mxu0 0
      %701 = vmatpush1.bf16.msra.mxu0 0
      %702 = vmatprep.subr.bf16.mxu0 0
      %703 = vmatpush1.bf16.msra.mxu0 0
      %704 = vmatprep.subr.bf16.mxu0 0
      %705 = vmatpush1.bf16.msra.mxu0 %v685
      %706 = vmatprep.subr.bf16.mxu0 0
      %707 = vmatpush2.bf16.msra.mxu0 0
      %708 = vmatprep.subr.bf16.mxu0 0
      %709 = vmatpush2.bf16.msra.mxu0 0
      %710 = vmatprep.subr.bf16.mxu0 0
      %711 = vmatpush2.bf16.msra.mxu0 0
      %712 = vmatprep.subr.bf16.mxu0 0
      %713 = vmatpush2.bf16.msra.mxu0 0
      %714 = vmatprep.subr.bf16.mxu0 0
      %715 = vmatpush2.bf16.msra.mxu0 0
      %716 = vmatprep.subr.bf16.mxu0 0
      %717 = vmatpush2.bf16.msra.mxu0 0
      %718 = vmatprep.subr.bf16.mxu0 0
      %719 = vmatpush2.bf16.msra.mxu0 0
      %720 = vmatprep.subr.bf16.mxu0 0
      %721 = vmatpush2.bf16.msra.mxu0 0
      %722 = vmatprep.mubr.bf16.mxu0 0
      %723 = vmatmul.mubr.bf16.gmra.mxu0 %v688
      %v724 = vpop.f32.mrf.mxu0
      %v725 = vadd.f32 %v679, %v724
      %v726 = vpop.f32.mrf.mxu0
      %v727 = vpop.f32.mrf.mxu0
      %v728 = vpop.f32.mrf.mxu0
      %729 = vdwg.mxu0
      %v730 = vadd.f32 %v725, %v465
      %v731 = vmul.f32 %v730, 0.70710677
      %v732 = vpack.c.bf16 %v731, %v731
      %v733 = vld [vmem:[%s448] sm:$0x1]
      %v735 = vlaneseq
      %v736 = vshrl.u32 %v735, 7
      %v737 = vsub.s32 0, %v736
      %v738 = vrot.slane %v733, %v737
      %v741 = vsel %vm499, %v732, 0
      %743 = vmatprep.subr.bf16.mxu0 0
      %744 = vmatpush1.bf16.xpose.msra.mxu0 0
      %745 = vmatprep.subr.bf16.mxu0 0
      %746 = vmatpush1.bf16.xpose.msra.mxu0 0
      %747 = vmatprep.subr.bf16.mxu0 0
      %748 = vmatpush1.bf16.xpose.msra.mxu0 0
      %749 = vmatprep.subr.bf16.mxu0 0
      %750 = vmatpush1.bf16.xpose.msra.mxu0 0
      %751 = vmatprep.subr.bf16.mxu0 0
      %752 = vmatpush1.bf16.xpose.msra.mxu0 0
      %753 = vmatprep.subr.bf16.mxu0 0
      %754 = vmatpush1.bf16.xpose.msra.mxu0 0
      %755 = vmatprep.subr.bf16.mxu0 0
      %756 = vmatpush1.bf16.xpose.msra.mxu0 0
      %757 = vmatprep.subr.bf16.mxu0 0
      %758 = vmatpush1.bf16.xpose.msra.mxu0 %v688
      %759 = vmatprep.subr.bf16.mxu0 0
      %760 = vmatpush2.bf16.xpose.msra.mxu0 0
      %761 = vmatprep.subr.bf16.mxu0 0
      %762 = vmatpush2.bf16.xpose.msra.mxu0 0
      %763 = vmatprep.subr.bf16.mxu0 0
      %764 = vmatpush2.bf16.xpose.msra.mxu0 0
      %765 = vmatprep.subr.bf16.mxu0 0
      %766 = vmatpush2.bf16.xpose.msra.mxu0 0
      %767 = vmatprep.subr.bf16.mxu0 0
      %768 = vmatpush2.bf16.xpose.msra.mxu0 0
      %769 = vmatprep.subr.bf16.mxu0 0
      %770 = vmatpush2.bf16.xpose.msra.mxu0 0
      %771 = vmatprep.subr.bf16.mxu0 0
      %772 = vmatpush2.bf16.xpose.msra.mxu0 0
      %773 = vmatprep.subr.bf16.mxu0 0
      %774 = vmatpush2.bf16.xpose.msra.mxu0 0
      %775 = vmatprep.mubr.bf16.mxu0 0
      %776 = vmatmul.mubr.bf16.gmra.mxu0 %v741
      %v777 = vpop.f32.mrf.mxu0
      %v778 = vadd.f32 %v738, %v777
      %v779 = vpop.f32.mrf.mxu0
      %v780 = vpop.f32.mrf.mxu0
      %v781 = vpop.f32.mrf.mxu0
      %782 = vdwg.mxu0
      %vm783 = vcmask 64512
      %v784 = vsel %vm783, %v778, -inf
      %785 = vmax.xlane.f32.xlu0 %v784
      %v786 = vpop.xlane.xlu0 %785
      %v787 = vsub.f32 %v778, %v786
      %v788 = vmul.f32 %v787, 1.442695
      %v789 = vpow.pop %v788
      %v790 = vsel %vm783, %v789, 0.0
      %791 = vadd.xlane.f32.xlu0 %v790
      %v792 = vpop.xlane.xlu0 %791
      %v793 = vrcp.pop %v792
      %v794 = vmul.f32 %v789, %v793
      %v795 = vpack.c.bf16 %v794, %v794
      %v797 = vsel %vm783, %v795, 0
      %vm799 = vcmask 1043456
      %v800 = vsel %vm799, %v671, 0
      %802 = vmatprep.subr.bf16.mxu0 0
      %803 = vmatpush1.bf16.msra.mxu0 0
      %804 = vmatprep.subr.bf16.mxu0 0
      %805 = vmatpush1.bf16.msra.mxu0 0
      %806 = vmatprep.subr.bf16.mxu0 0
      %807 = vmatpush1.bf16.msra.mxu0 0
      %808 = vmatprep.subr.bf16.mxu0 0
      %809 = vmatpush1.bf16.msra.mxu0 0
      %810 = vmatprep.subr.bf16.mxu0 0
      %811 = vmatpush1.bf16.msra.mxu0 0
      %812 = vmatprep.subr.bf16.mxu0 0
      %813 = vmatpush1.bf16.msra.mxu0 0
      %814 = vmatprep.subr.bf16.mxu0 0
      %815 = vmatpush1.bf16.msra.mxu0 0
      %816 = vmatprep.subr.bf16.mxu0 0
      %817 = vmatpush1.bf16.msra.mxu0 %v800
      %818 = vmatprep.subr.bf16.mxu0 0
      %819 = vmatpush2.bf16.msra.mxu0 0
      %820 = vmatprep.subr.bf16.mxu0 0
      %821 = vmatpush2.bf16.msra.mxu0 0
      %822 = vmatprep.subr.bf16.mxu0 0
      %823 = vmatpush2.bf16.msra.mxu0 0
      %824 = vmatprep.subr.bf16.mxu0 0
      %825 = vmatpush2.bf16.msra.mxu0 0
      %826 = vmatprep.subr.bf16.mxu0 0
      %827 = vmatpush2.bf16.msra.mxu0 0
      %828 = vmatprep.subr.bf16.mxu0 0
      %829 = vmatpush2.bf16.msra.mxu0 0
      %830 = vmatprep.subr.bf16.mxu0 0
      %831 = vmatpush2.bf16.msra.mxu0 0
      %832 = vmatprep.subr.bf16.mxu0 0
      %833 = vmatpush2.bf16.msra.mxu0 0
      %834 = vmatprep.mubr.bf16.mxu0 0
      %835 = vmatmul.mubr.bf16.gmra.mxu0 %v797
      %v836 = vpop.f32.mrf.mxu0
      %v837 = vadd.f32 0.0, %v836
      %v838 = vpop.f32.mrf.mxu0
      %v839 = vpop.f32.mrf.mxu0
      %v840 = vpop.f32.mrf.mxu0
      %841 = vdwg.mxu0
      %v842 = vmul.f32 %v837, 2.828427
      %v843 = vpack.c.bf16 %v842, %v842
      %v844 = vld [vmem:[%s8] sm:$0xf]
      %v845 = vld [vmem:[%s8 + $0x4] sm:$0xf]
      %v846 = vld [vmem:[%s9] sm:$0x1]
      %v848 = vlaneseq
      %v849 = vshrl.u32 %v848, 7
      %v850 = vsub.s32 0, %v849
      %v851 = vrot.slane %v846, %v850
      %v855 = vunpack.c.l.b16 %v844
      %v856 = vunpack.c.l.b16 %v845
      %v857 = vpack.c.b16 %v856, %v855
      %v860 = vsel %vm499, %v843, 0
      %862 = vmatprep.subr.bf16.mxu0 0
      %863 = vmatpush1.bf16.msra.mxu0 0
      %864 = vmatprep.subr.bf16.mxu0 0
      %865 = vmatpush1.bf16.msra.mxu0 0
      %866 = vmatprep.subr.bf16.mxu0 0
      %867 = vmatpush1.bf16.msra.mxu0 0
      %868 = vmatprep.subr.bf16.mxu0 0
      %869 = vmatpush1.bf16.msra.mxu0 0
      %870 = vmatprep.subr.bf16.mxu0 0
      %871 = vmatpush1.bf16.msra.mxu0 0
      %872 = vmatprep.subr.bf16.mxu0 0
      %873 = vmatpush1.bf16.msra.mxu0 0
      %874 = vmatprep.subr.bf16.mxu0 0
      %875 = vmatpush1.bf16.msra.mxu0 0
      %876 = vmatprep.subr.bf16.mxu0 0
      %877 = vmatpush1.bf16.msra.mxu0 %v857
      %878 = vmatprep.subr.bf16.mxu0 0
      %879 = vmatpush2.bf16.msra.mxu0 0
      %880 = vmatprep.subr.bf16.mxu0 0
      %881 = vmatpush2.bf16.msra.mxu0 0
      %882 = vmatprep.subr.bf16.mxu0 0
      %883 = vmatpush2.bf16.msra.mxu0 0
      %884 = vmatprep.subr.bf16.mxu0 0
      %885 = vmatpush2.bf16.msra.mxu0 0
      %886 = vmatprep.subr.bf16.mxu0 0
      %887 = vmatpush2.bf16.msra.mxu0 0
      %888 = vmatprep.subr.bf16.mxu0 0
      %889 = vmatpush2.bf16.msra.mxu0 0
      %890 = vmatprep.subr.bf16.mxu0 0
      %891 = vmatpush2.bf16.msra.mxu0 0
      %892 = vmatprep.subr.bf16.mxu0 0
      %893 = vmatpush2.bf16.msra.mxu0 0
      %894 = vmatprep.mubr.bf16.mxu0 0
      %895 = vmatmul.mubr.bf16.gmra.mxu0 %v860
      %v896 = vpop.f32.mrf.mxu0
      %v897 = vadd.f32 %v851, %v896
      %v898 = vpop.f32.mrf.mxu0
      %v899 = vpop.f32.mrf.mxu0
      %v900 = vpop.f32.mrf.mxu0
      %901 = vdwg.mxu0
      %v902 = vadd.f32 %v897, %v670
      %v903 = vmul.f32 %v902, 0.70710677
      %v904 = vxor.u32 %v903, 2147483648
      %v905 = vmul.f32 %v904, 1.442695
      %v906 = vpow.pop %v905
      %v907 = vadd.f32 %v906, 1.0
      %v908 = vrcp.pop %v907
      %v909 = vmul.f32 1.0, %v908
      %v910 = vmul.f32 %v670, %v909
      %v911 = vld [vmem:[%s452] sm:$0xff]
      %v912 = vadd.f32 %v910, %v911
      %v913 = vmul.f32 %v912, 0.70710677
      %v914 = vld [vmem:[%s10] sm:$0x1]
      %v915 = vld [vmem:[%s11] sm:$0x1]
      %v916 = vsel %vm499, %v913, 0.0
      %917 = vadd.xlane.f32.xlu0 %v916
      %v918 = vpop.xlane.xlu0 %917
      %v919 = vrcp.pop 16.0
      %v920 = vmul.f32 %v918, %v919
      %v921 = vsub.f32 %v913, %v920
      %v922 = vmul.f32 %v921, %v921
      %v923 = vsel %vm499, %v922, 0.0
      %924 = vadd.xlane.f32.xlu0 %v923
      %v925 = vpop.xlane.xlu0 %924
      %v926 = vmul.f32 %v925, %v919
      %v927 = vadd.f32 %v926, 1e-05
      %v928 = vrsqrt.pop %v927
      %v929 = vmul.f32 %v921, %v928
      %v931 = vlaneseq
      %v932 = vshrl.u32 %v931, 7
      %v933 = vsub.s32 0, %v932
      %v934 = vrot.slane %v914, %v933
      %v936 = vmul.f32 %v929, %v934
      %v938 = vlaneseq
      %v939 = vshrl.u32 %v938, 7
      %v940 = vsub.s32 0, %v939
      %v941 = vrot.slane %v915, %v940
      %v943 = vadd.f32 %v936, %v941
      %944 = vst.msk [vmem:[%s456] sm:$0xff] %vm499, %v943
      %p945 = scmp.lt.s32.totalorder %s23, 1
      %s946 = scalar_select %p945, %s23, 1
      %s947 = smul.addr %s946, 8
      %s948 = scalar_lea.vmem %s12, %s947
      // Predicated region
      $region69: #{forward.8} parent=67 // pred_check
        %p949 = pneg %p313
      $region70: #{forward.8} parent=67 // pred_check_branch
        %951 = sbr.rel (%p949) target = $region72
      $region71: #{forward.8} parent=67 // pred_region
        _
      $region72: #{forward.8} parent=67 // pred_fallthru
        _
    $region68: #{forward.8} parent=5 // pred_fallthru
      _
    %p952 = scmp.le.s32.totalorder 2, %s18
    // Predicated region
    $region73: #{forward.8} parent=5 // pred_check
      %p953 = pneg %p952
    $region74: #{forward.8} parent=5 // pred_check_branch
      %955 = sbr.rel (%p953) target = $region76
    $region75: #{forward.8} parent=5 // pred_region
      %s956 = ssub.s32 %s18, 2
      // Predicated region
      $region77: #{forward.8} parent=75 // pred_check
        %p957 = pneg %p319
      $region78: #{forward.8} parent=75 // pred_check_branch
        %959 = sbr.rel (%p957) target = $region80
      $region79: #{forward.8} parent=75 // pred_region
        %p960 = scmp.lt.s32.totalorder %s24, 1
        %s961 = scalar_select %p960, %s24, 1
        %s962 = smul.addr %s961, 8
        %s963 = scalar_lea.vmem %s12, %s962
      $region80: #{forward.8} parent=75 // pred_fallthru
        _
    $region76: #{forward.8} parent=5 // pred_fallthru
      _
  $region6: #{forward.8} parent=0 // loop_footer
    %s22 = sadd.s32 1, %s18
  $region7: #{forward.8} parent=0 // loop_footer_branch
    %17 = sbr.rel target = $region3
  $region8: #{forward.8} parent=0 // loop_exit
    _

</llo_original>
